<compile_context>
chip_gen: v7x
topology: tpu7x:2x2x1
jax: 0.10.0
libtpu: 0.0.40
codegen_flags: <defaults>
</compile_context>

<pallas_src>
import math

import jax
import jax.numpy as jnp
from jax.experimental import pallas as pl
from jax.experimental.pallas import tpu as pltpu

LATENT = 100
H1, H2, H3 = 256, 512, 1024
N_OUT = 3 * 128 * 128          # 49152
TN = 8192                      # layer-4 output-column tile -> 6 grid steps
NB = N_OUT // TN               # 6


def _head_kernel(z_ref, w1_ref, b1_ref, w2_ref, b2_ref, w3_ref, b3_ref, h_ref):
    """Layers 1-3, computed exactly once; output h in bf16."""
    h = jnp.dot(z_ref[...], w1_ref[...],
                preferred_element_type=jnp.float32) + b1_ref[...]
    h = jnp.maximum(h, 0.0)
    h = jnp.dot(h.astype(jnp.bfloat16), w2_ref[...],
                preferred_element_type=jnp.float32) + b2_ref[...]
    h = jnp.maximum(h, 0.0)
    h = jnp.dot(h.astype(jnp.bfloat16), w3_ref[...],
                preferred_element_type=jnp.float32) + b3_ref[...]
    h = jnp.maximum(h, 0.0)
    h_ref[...] = h.astype(jnp.bfloat16)


def _stream_kernel(h_ref, w4_ref, b4_ref, o_ref):
    """Layer 4: one pre-blocked contiguous bf16 W4 tile streamed per grid step."""
    y = jnp.dot(h_ref[...], w4_ref[...],
                preferred_element_type=jnp.float32) + b4_ref[...]
    o_ref[...] = jnp.tanh(y)


def generator_forward(params, z):
    w1, b1, w2, b2, w3, b3, w4b, b4 = params
    M = z.shape[0]
    # Pre-cast latent to bf16 once (micro-opt: no per-step casts anywhere).
    z_bf16 = z.astype(jnp.bfloat16)

    # --- Stage 1: tiny fused MLP head (everything resident, single step) ---
    h = pl.pallas_call(
        _head_kernel,
        out_shape=jax.ShapeDtypeStruct((M, H3), jnp.bfloat16),
    )(z_bf16, w1, b1, w2, b2, w3, b3)

    # --- Stage 2: HBM-bound W4 streaming over output columns ---
    y = pl.pallas_call(
        _stream_kernel,
        out_shape=jax.ShapeDtypeStruct((M, N_OUT), jnp.float32),
        grid_spec=pltpu.PrefetchScalarGridSpec(
            num_scalar_prefetch=0,
            grid=(NB,),
            in_specs=[
                pl.BlockSpec((M, H3), lambda j: (0, 0)),            # h (resident)
                pl.BlockSpec((None, H3, TN), lambda j: (j, 0, 0)),  # W4 block j
                pl.BlockSpec((1, TN), lambda j: (0, j)),            # b4 tile
            ],
            out_specs=pl.BlockSpec((M, TN), lambda j: (0, j)),
        ),
        compiler_params=pltpu.CompilerParams(
            dimension_semantics=("parallel",),
            vmem_limit_bytes=48 << 20,   # 2 x 16 MiB W4 buffers + small extras
        ),
    )(h, w4b, b4)
    # Row-major flatten of the 49152-wide feature vector == torch .view
    return y.reshape(-1, 3, 128, 128)


def init_generator_params(key):
    """PyTorch-style default init U(-1/sqrt(fan_in), 1/sqrt(fan_in))."""
    dims = [(LATENT, H1), (H1, H2), (H2, H3), (H3, N_OUT)]
    raw = []
    for fan_in, fan_out in dims:
        key, kw, kb = jax.random.split(key, 3)
        bound = 1.0 / math.sqrt(fan_in)
        w = jax.random.uniform(kw, (fan_in, fan_out), jnp.float32, -bound, bound)
        b = jax.random.uniform(kb, (fan_out,), jnp.float32, -bound, bound)
        raw.append((w, b))
    (w1, b1), (w2, b2), (w3, b3), (w4, b4) = raw
    # Weights in bf16 (halves HBM traffic of the dominant W4 read); biases f32.
    w1, w2, w3 = (w.astype(jnp.bfloat16) for w in (w1, w2, w3))
    # Pre-block W4: (1024, 49152) -> (NB, 1024, TN) so each tile DMA is contiguous.
    w4b = w4.astype(jnp.bfloat16).reshape(H3, NB, TN).transpose(1, 0, 2)
    return (w1, b1.reshape(1, H1),
            w2, b2.reshape(1, H2),
            w3, b3.reshape(1, H3),
            w4b, b4.reshape(1, N_OUT))


def generator_reference(params, z):
    """Pure-JAX reference with matched numerics (bf16 matmuls, f32 accumulate).
    Note: vs. a true f32 PyTorch Generator the bf16 casts introduce small
    (tanh-bounded) deviations; they are identical here by construction."""
    w1, b1, w2, b2, w3, b3, w4b, b4 = params
    w4 = w4b.transpose(1, 0, 2).reshape(H3, N_OUT)
    x = z
    for w, b, act in ((w1, b1, "relu"), (w2, b2, "relu"),
                      (w3, b3, "relu"), (w4, b4, "tanh")):
        x = jnp.dot(x.astype(jnp.bfloat16), w,
                    preferred_element_type=jnp.float32) + b
        x = jnp.maximum(x, 0.0) if act == "relu" else jnp.tanh(x)
    return x.reshape(-1, 3, 128, 128)


if __name__ == "__main__":
    key = jax.random.PRNGKey(0)
    k_param, k_z = jax.random.split(key)

    params = init_generator_params(k_param)
    batch = 2   # NOTE: tiling is sized for small batch; re-derive if M grows large.
    z = jax.random.normal(k_z, (batch, LATENT), jnp.float32)

    out = jax.block_until_ready(generator_forward(params, z))
    assert out.shape == (batch, 3, 128, 128), out.shape

    ref = generator_reference(params, z)
    assert jnp.allclose(out, ref, rtol=2e-3, atol=2e-3), \
        float(jnp.max(jnp.abs(out - ref)))

    print("KERNEL_OK")
</pallas_src>

<mosaic_0001>
module attributes {stable_mosaic.version = 11 : i64} {
  func.func @_head_kernel(%arg0: memref<2x100xbf16, #tpu.memory_space<vmem>>, %arg1: memref<100x256xbf16, #tpu.memory_space<vmem>>, %arg2: memref<1x256xf32, #tpu.memory_space<vmem>>, %arg3: memref<256x512xbf16, #tpu.memory_space<vmem>>, %arg4: memref<1x512xf32, #tpu.memory_space<vmem>>, %arg5: memref<512x1024xbf16, #tpu.memory_space<vmem>>, %arg6: memref<1x1024xf32, #tpu.memory_space<vmem>>, %arg7: memref<2x1024xbf16, #tpu.memory_space<vmem>>) attributes {dimension_semantics = [], scalar_prefetch = 0 : i64, scratch_operands = 0 : i64, tpu.core_type = #tpu.core_type<tc>} {
    %c0 = arith.constant 0 : index
    %c0_0 = arith.constant 0 : index
    %0 = vector.load %arg0[%c0, %c0_0] : memref<2x100xbf16, #tpu.memory_space<vmem>>, vector<2x100xbf16>
    %c0_1 = arith.constant 0 : index
    %c0_2 = arith.constant 0 : index
    %1 = vector.load %arg1[%c0_1, %c0_2] : memref<100x256xbf16, #tpu.memory_space<vmem>>, vector<100x256xbf16>
    %cst = arith.constant dense<0.000000e+00> : vector<2x256xf32>
    %2 = tpu.matmul %0, %1, %cst {dimension_numbers = #tpu.dot_dimension_numbers<[1], [0], [0], [1], [0, 0, 1, 1], [], []>} : vector<2x100xbf16>, vector<100x256xbf16>, vector<2x256xf32> -> vector<2x256xf32>
    %c0_3 = arith.constant 0 : index
    %c0_4 = arith.constant 0 : index
    %3 = vector.load %arg2[%c0_3, %c0_4] : memref<1x256xf32, #tpu.memory_space<vmem>>, vector<1x256xf32>
    %4 = vector.broadcast %3 : vector<1x256xf32> to vector<2x256xf32>
    %5 = arith.addf %2, %4 : vector<2x256xf32>
    %cst_5 = arith.constant 0.000000e+00 : f32
    %6 = vector.broadcast %cst_5 : f32 to vector<2x256xf32>
    %7 = arith.maximumf %5, %6 : vector<2x256xf32>
    %8 = arith.truncf %7 : vector<2x256xf32> to vector<2x256xbf16>
    %c0_6 = arith.constant 0 : index
    %c0_7 = arith.constant 0 : index
    %9 = vector.load %arg3[%c0_6, %c0_7] : memref<256x512xbf16, #tpu.memory_space<vmem>>, vector<256x512xbf16>
    %cst_8 = arith.constant dense<0.000000e+00> : vector<2x512xf32>
    %10 = tpu.matmul %8, %9, %cst_8 {dimension_numbers = #tpu.dot_dimension_numbers<[1], [0], [0], [1], [0, 0, 1, 1], [], []>} : vector<2x256xbf16>, vector<256x512xbf16>, vector<2x512xf32> -> vector<2x512xf32>
    %c0_9 = arith.constant 0 : index
    %c0_10 = arith.constant 0 : index
    %11 = vector.load %arg4[%c0_9, %c0_10] : memref<1x512xf32, #tpu.memory_space<vmem>>, vector<1x512xf32>
    %12 = vector.broadcast %11 : vector<1x512xf32> to vector<2x512xf32>
    %13 = arith.addf %10, %12 : vector<2x512xf32>
    %cst_11 = arith.constant 0.000000e+00 : f32
    %14 = vector.broadcast %cst_11 : f32 to vector<2x512xf32>
    %15 = arith.maximumf %13, %14 : vector<2x512xf32>
    %16 = arith.truncf %15 : vector<2x512xf32> to vector<2x512xbf16>
    %c0_12 = arith.constant 0 : index
    %c0_13 = arith.constant 0 : index
    %17 = vector.load %arg5[%c0_12, %c0_13] : memref<512x1024xbf16, #tpu.memory_space<vmem>>, vector<512x1024xbf16>
    %cst_14 = arith.constant dense<0.000000e+00> : vector<2x1024xf32>
    %18 = tpu.matmul %16, %17, %cst_14 {dimension_numbers = #tpu.dot_dimension_numbers<[1], [0], [0], [1], [0, 0, 1, 1], [], []>} : vector<2x512xbf16>, vector<512x1024xbf16>, vector<2x1024xf32> -> vector<2x1024xf32>
    %c0_15 = arith.constant 0 : index
    %c0_16 = arith.constant 0 : index
    %19 = vector.load %arg6[%c0_15, %c0_16] : memref<1x1024xf32, #tpu.memory_space<vmem>>, vector<1x1024xf32>
    %20 = vector.broadcast %19 : vector<1x1024xf32> to vector<2x1024xf32>
    %21 = arith.addf %18, %20 : vector<2x1024xf32>
    %cst_17 = arith.constant 0.000000e+00 : f32
    %22 = vector.broadcast %cst_17 : f32 to vector<2x1024xf32>
    %23 = arith.maximumf %21, %22 : vector<2x1024xf32>
    %24 = arith.truncf %23 : vector<2x1024xf32> to vector<2x1024xbf16>
    %c0_18 = arith.constant 0 : index
    %c0_19 = arith.constant 0 : index
    %25 = vector.load %arg7[%c0_18, %c0_19] : memref<2x1024xbf16, #tpu.memory_space<vmem>>, vector<2x1024xbf16>
    tpu.vector_store %arg7[%c0_18, %c0_19], %24 {strides = array<i32>} : memref<2x1024xbf16, #tpu.memory_space<vmem>>, vector<2x1024xbf16>,
    return
  }
}

</mosaic_0001>

<llo_original>
// kernel: tpu_custom_call.1
$region0: #{tpu_custom_call.1}
  #allocation0 [shape = 'u32[]', space=smem, size = 0x4, offset = 0x4, fixed_abs, tag = 'smem constant byte address 0x4 - core index']
  #allocation1 [shape = 'u32[144,128]{1,0:T(1,128)}', space=vmem, size = 0x12000, scoped, tag = 'internal scratch']
  %s0 = inlined_call_operand.hbm [shape: bf16[2,100], index: 0, kind: input, shape index: {}]
  %s1 = inlined_call_operand.hbm [shape: bf16[100,256], index: 1, kind: input, shape index: {}]
  %s2 = inlined_call_operand.vmem [shape: f32[1,256], index: 2, kind: input, shape index: {}]
  %s3 = inlined_call_operand.hbm [shape: bf16[256,512], index: 3, kind: input, shape index: {}]
  %s4 = inlined_call_operand.vmem [shape: f32[1,512], index: 4, kind: input, shape index: {}]
  %s5 = inlined_call_operand.hbm [shape: bf16[512,1024], index: 5, kind: input, shape index: {}]
  %s6 = inlined_call_operand.vmem [shape: f32[1,1024], index: 6, kind: input, shape index: {}]
  %s7 = inlined_call_operand.hbm [shape: bf16[2,1024], index: 7, kind: output, shape index: {}]
  %s8 = sld [smem:[#allocation0]]
  $region54: #{tpu_custom_call.1} parent=0
    _
  %s10 = ssub.s32 1, %s8
  %s11 = scalar_select 0, %s10, %s8
  $region1: #{tpu_custom_call.1} parent=0
    #allocation2 [shape = 'u8[512]{0}', space=vmem, size = 0x400, scoped, tag = 'input window, operand 0, single buffered']
    #allocation3 [shape = 's32[1]{0}', space=sflag, size = 0x4, scoped, tag = 'scoped memory for tpu_custom_call.1']
    #allocation4 [shape = 's32[1]{0}', space=sflag, size = 0x4, scoped, tag = 'scoped memory for tpu_custom_call.1']
    #allocation5 [shape = 'u8[53248]{0}', space=vmem, size = 0xd000, scoped, tag = 'input window, operand 1, single buffered']
    #allocation6 [shape = 's32[1]{0}', space=sflag, size = 0x4, scoped, tag = 'scoped memory for tpu_custom_call.1']
    #allocation7 [shape = 'u8[262144]{0}', space=vmem, size = 0x40000, scoped, tag = 'input window, operand 3, single buffered']
    #allocation8 [shape = 'u8[1048576]{0}', space=vmem, size = 0x100000, scoped, tag = 'input window, operand 5, single buffered']
    #allocation9 [shape = 's32[1]{0}', space=sflag, size = 0x4, scoped, tag = 'scoped memory for tpu_custom_call.1']
    #allocation10 [shape = 'u8[4096]{0}', space=vmem, size = 0x1000, scoped, tag = 'output window, operand 0, single buffered']
    %12 = vsyncpa [#allocation3], 0
    %13 = vsyncpa [#allocation6], 0
    %14 = vsyncpa [#allocation9], 0
    %15 = vsyncpa [#allocation4], 0
    // Predicated region
    $region2: #{tpu_custom_call.1} parent=1 // pred_check
      _
    $region3: #{tpu_custom_call.1} parent=1 // pred_check_branch
      %17 = sbr.rel (0) target = $region5
    $region4: #{tpu_custom_call.1} parent=1 // pred_region
      %s19 = ssub.s32 16, 16
      %20 = vsyncadd [#allocation3], %s19
      %s22 = sshll.u32 [#allocation2], 4
      %s23 = int_to_ptr.vmem [resolvable:$true] %s22
      %25 = dma.hbm_to_vmem [thread:$0]  %s0, 16, %s23, [#allocation3]
    $region5: #{tpu_custom_call.1} parent=1 // pred_fallthru
      _
    // Predicated region
    $region6: #{tpu_custom_call.1} parent=1 // pred_check
      _
    $region7: #{tpu_custom_call.1} parent=1 // pred_check_branch
      %27 = sbr.rel (0) target = $region9
    $region8: #{tpu_custom_call.1} parent=1 // pred_region
      %s29 = ssub.s32 1664, 1664
      %30 = vsyncadd [#allocation6], %s29
      %s31 = sshll.u32 [#allocation5], 4
      %s32 = int_to_ptr.vmem [resolvable:$true] %s31
      %37 = dma.hbm_to_vmem [thread:$0]  %s1, 1664, %s32, [#allocation6], 128, 128, 8
    $region9: #{tpu_custom_call.1} parent=1 // pred_fallthru
      _
    // Predicated region
    $region10: #{tpu_custom_call.1} parent=1 // pred_check
      _
    $region11: #{tpu_custom_call.1} parent=1 // pred_check_branch
      %39 = sbr.rel (0) target = $region13
    $region12: #{tpu_custom_call.1} parent=1 // pred_region
      _
    $region13: #{tpu_custom_call.1} parent=1 // pred_fallthru
      _
    // Predicated region
    $region14: #{tpu_custom_call.1} parent=1 // pred_check
      _
    $region15: #{tpu_custom_call.1} parent=1 // pred_check_branch
      %41 = sbr.rel (0) target = $region17
    $region16: #{tpu_custom_call.1} parent=1 // pred_region
      %s43 = ssub.s32 8192, 8192
      %44 = vsyncadd [#allocation6], %s43
      %s45 = sshll.u32 [#allocation7], 4
      %s46 = int_to_ptr.vmem [resolvable:$true] %s45
      %51 = dma.hbm_to_vmem [thread:$0]  %s3, 8192, %s46, [#allocation6], 256, 256, 16
    $region17: #{tpu_custom_call.1} parent=1 // pred_fallthru
      _
    // Predicated region
    $region18: #{tpu_custom_call.1} parent=1 // pred_check
      _
    $region19: #{tpu_custom_call.1} parent=1 // pred_check_branch
      %53 = sbr.rel (0) target = $region21
    $region20: #{tpu_custom_call.1} parent=1 // pred_region
      _
    $region21: #{tpu_custom_call.1} parent=1 // pred_fallthru
      _
    // Predicated region
    $region22: #{tpu_custom_call.1} parent=1 // pred_check
      _
    $region23: #{tpu_custom_call.1} parent=1 // pred_check_branch
      %55 = sbr.rel (0) target = $region25
    $region24: #{tpu_custom_call.1} parent=1 // pred_region
      %s57 = ssub.s32 32768, 32768
      %58 = vsyncadd [#allocation9], %s57
      %s59 = sshll.u32 [#allocation8], 4
      %s60 = int_to_ptr.vmem [resolvable:$true] %s59
      %65 = dma.hbm_to_vmem [thread:$0]  %s5, 32768, %s60, [#allocation9], 512, 512, 32
    $region25: #{tpu_custom_call.1} parent=1 // pred_fallthru
      _
    // Predicated region
    $region26: #{tpu_custom_call.1} parent=1 // pred_check
      _
    $region27: #{tpu_custom_call.1} parent=1 // pred_check_branch
      %67 = sbr.rel (0) target = $region29
    $region28: #{tpu_custom_call.1} parent=1 // pred_region
      _
    $region29: #{tpu_custom_call.1} parent=1 // pred_fallthru
      _
    // Predicated region
    $region30: #{tpu_custom_call.1} parent=1 // pred_check
      _
    $region31: #{tpu_custom_call.1} parent=1 // pred_check_branch
      %69 = sbr.rel (0) target = $region33
    $region32: #{tpu_custom_call.1} parent=1 // pred_region
      %70 = dma.done [#allocation3], 16
    $region33: #{tpu_custom_call.1} parent=1 // pred_fallthru
      _
    // Predicated region
    $region34: #{tpu_custom_call.1} parent=1 // pred_check
      _
    $region35: #{tpu_custom_call.1} parent=1 // pred_check_branch
      %72 = sbr.rel (0) target = $region37
    $region36: #{tpu_custom_call.1} parent=1 // pred_region
      %73 = dma.done [#allocation6], 1664
    $region37: #{tpu_custom_call.1} parent=1 // pred_fallthru
      _
    // Predicated region
    $region38: #{tpu_custom_call.1} parent=1 // pred_check
      _
    $region39: #{tpu_custom_call.1} parent=1 // pred_check_branch
      %75 = sbr.rel (0) target = $region41
    $region40: #{tpu_custom_call.1} parent=1 // pred_region
      %76 = dma.done [#allocation6], 8192
    $region41: #{tpu_custom_call.1} parent=1 // pred_fallthru
      _
    // Predicated region
    $region42: #{tpu_custom_call.1} parent=1 // pred_check
      _
    $region43: #{tpu_custom_call.1} parent=1 // pred_check_branch
      %78 = sbr.rel (0) target = $region45
    $region44: #{tpu_custom_call.1} parent=1 // pred_region
      %79 = dma.done [#allocation9], 32768
    $region45: #{tpu_custom_call.1} parent=1 // pred_fallthru
      _
    %v81 = vld [vmem:[#allocation2] sm:$0x1]
    %v82 = vld [vmem:[#allocation5] sm:$0xff]
    %v83 = vld [vmem:[#allocation5 + $0x8] sm:$0xff]
    %v84 = vld [vmem:[#allocation5 + $0x10] sm:$0xff]
    %v85 = vld [vmem:[#allocation5 + $0x18] sm:$0xff]
    %v86 = vld [vmem:[#allocation5 + $0x20] sm:$0xff]
    %v87 = vld [vmem:[#allocation5 + $0x28] sm:$0xff]
    %v88 = vld [vmem:[#allocation5 + $0x30] sm:$0xff]
    %v89 = vld [vmem:[#allocation5 + $0x38] sm:$0xff]
    %v90 = vld [vmem:[#allocation5 + $0x40] sm:$0xff]
    %v91 = vld [vmem:[#allocation5 + $0x48] sm:$0xff]
    %v92 = vld [vmem:[#allocation5 + $0x50] sm:$0xff]
    %v93 = vld [vmem:[#allocation5 + $0x58] sm:$0xff]
    %v94 = vld [vmem:[#allocation5 + $0x60] sm:$0x33]
    %v95 = vld [vmem:[%s2] sm:$0x3]
    %v97 = vlaneseq
    %v98 = vshrl.u32 %v97, 7
    %v99 = vsub.s32 0, %v98
    %v100 = vrot.slane %v95, %v99
    %v101 = vlaneseq
    %v102 = vshrl.u32 %v101, 7
    %v103 = vsub.s32 1, %v102
    %v104 = vrot.slane %v95, %v103
    %v120 = vunpack.c.l.b16 %v82
    %v121 = vunpack.c.h.b16 %v82
    %v122 = vunpack.c.l.b16 %v83
    %v123 = vunpack.c.h.b16 %v83
    %v124 = vunpack.c.l.b16 %v84
    %v125 = vunpack.c.h.b16 %v84
    %v126 = vunpack.c.l.b16 %v85
    %v127 = vunpack.c.h.b16 %v85
    %v128 = vunpack.c.l.b16 %v86
    %v129 = vunpack.c.h.b16 %v86
    %v130 = vunpack.c.l.b16 %v87
    %v131 = vunpack.c.h.b16 %v87
    %v132 = vunpack.c.l.b16 %v88
    %v133 = vunpack.c.h.b16 %v88
    %v134 = vunpack.c.l.b16 %v89
    %v135 = vunpack.c.h.b16 %v89
    %v136 = vunpack.c.l.b16 %v90
    %v137 = vunpack.c.h.b16 %v90
    %v138 = vunpack.c.l.b16 %v91
    %v139 = vunpack.c.h.b16 %v91
    %v140 = vunpack.c.l.b16 %v92
    %v141 = vunpack.c.h.b16 %v92
    %v142 = vunpack.c.l.b16 %v93
    %v143 = vunpack.c.h.b16 %v93
    %v144 = vunpack.c.l.b16 %v94
    %v145 = vunpack.c.h.b16 %v94
    %v146 = vpack.c.b16 %v122, %v120
    %v147 = vpack.c.b16 %v123, %v121
    %v148 = vpack.c.b16 %v126, %v124
    %v149 = vpack.c.b16 %v127, %v125
    %v150 = vpack.c.b16 %v130, %v128
    %v151 = vpack.c.b16 %v131, %v129
    %v152 = vpack.c.b16 %v134, %v132
    %v153 = vpack.c.b16 %v135, %v133
    %v154 = vpack.c.b16 %v138, %v136
    %v155 = vpack.c.b16 %v139, %v137
    %v156 = vpack.c.b16 %v142, %v140
    %v157 = vpack.c.b16 %v143, %v141
    %v158 = vpack.c.b16 %v144, %v144
    %v159 = vpack.c.b16 %v145, %v145
    %vm172 = vcmask 818176
    %v174 = vsel %vm172, %v81, 0
    %vm176 = vcmask 1041408
    %v178 = vsel %vm176, %v158, 0
    %v181 = vsel %vm176, %v159, 0
    %183 = vmatprep.subr.bf16.mxu0 %v147
    %184 = vmatpush1.bf16.msra.mxu0 %v146
    %185 = vmatprep.subr.bf16.mxu0 %v149
    %186 = vmatpush1.bf16.msra.mxu0 %v148
    %187 = vmatprep.subr.bf16.mxu0 %v151
    %188 = vmatpush1.bf16.msra.mxu0 %v150
    %189 = vmatprep.subr.bf16.mxu0 %v153
    %190 = vmatpush1.bf16.msra.mxu0 %v152
    %191 = vmatprep.subr.bf16.mxu0 %v155
    %192 = vmatpush1.bf16.msra.mxu0 %v154
    %193 = vmatprep.subr.bf16.mxu0 %v157
    %194 = vmatpush1.bf16.msra.mxu0 %v156
    %195 = vmatprep.subr.bf16.mxu0 %v181
    %196 = vmatpush1.bf16.msra.mxu0 %v178
    %197 = vmatprep.subr.bf16.mxu0 0
    %198 = vmatpush1.bf16.msra.mxu0 0
    %199 = vmatprep.subr.bf16.mxu0 0
    %200 = vmatpush1.bf16.msra.mxu0 0
    %201 = vmatprep.subr.bf16.mxu0 0
    %202 = vmatpush1.bf16.msra.mxu0 0
    %203 = vmatprep.subr.bf16.mxu0 0
    %204 = vmatpush1.bf16.msra.mxu0 0
    %205 = vmatprep.subr.bf16.mxu0 0
    %206 = vmatpush1.bf16.msra.mxu0 0
    %207 = vmatprep.subr.bf16.mxu0 0
    %208 = vmatpush1.bf16.msra.mxu0 0
    %209 = vmatprep.subr.bf16.mxu0 0
    %210 = vmatpush1.bf16.msra.mxu0 0
    %211 = vmatprep.subr.bf16.mxu0 0
    %212 = vmatpush1.bf16.msra.mxu0 0
    %213 = vmatprep.subr.bf16.mxu0 0
    %214 = vmatpush1.bf16.msra.mxu0 0
    %215 = vmatprep.mubr.bf16.mxu0 0
    %216 = vmatmul.mubr.bf16.gmra.mrb[0].mxu0 %v174
    %v217 = vpop.f32.mrb[0].mxu0
    %v218 = vadd.f32 %v100, %v217
    %v219 = vpop.f32.mrb[0].mxu0
    %v220 = vadd.f32 %v104, %v219
    %v221 = vpop.f32.mrb[0].mxu0
    %v222 = vpop.f32.mrb[0].mxu0
    %223 = vdwg.mxu0
    %v224 = vmax.f32 %v218, 0.0
    %v225 = vmax.f32 %v220, 0.0
    %v226 = vpack.c.bf16 %v224, %v224
    %v227 = vpack.c.bf16 %v225, %v225
    %v228 = vld [vmem:[#allocation7] sm:$0xff]
    %v229 = vld [vmem:[#allocation7 + $0x8] sm:$0xff]
    %v230 = vld [vmem:[#allocation7 + $0x10] sm:$0xff]
    %v231 = vld [vmem:[#allocation7 + $0x18] sm:$0xff]
    %v232 = vld [vmem:[#allocation7 + $0x20] sm:$0xff]
    %v233 = vld [vmem:[#allocation7 + $0x28] sm:$0xff]
    %v234 = vld [vmem:[#allocation7 + $0x30] sm:$0xff]
    %v235 = vld [vmem:[#allocation7 + $0x38] sm:$0xff]
    %v236 = vld [vmem:[#allocation7 + $0x40] sm:$0xff]
    %v237 = vld [vmem:[#allocation7 + $0x48] sm:$0xff]
    %v238 = vld [vmem:[#allocation7 + $0x50] sm:$0xff]
    %v239 = vld [vmem:[#allocation7 + $0x58] sm:$0xff]
    %v240 = vld [vmem:[#allocation7 + $0x60] sm:$0xff]
    %v241 = vld [vmem:[#allocation7 + $0x68] sm:$0xff]
    %v242 = vld [vmem:[#allocation7 + $0x70] sm:$0xff]
    %v243 = vld [vmem:[#allocation7 + $0x78] sm:$0xff]
    %v244 = vld [vmem:[#allocation7 + $0x80] sm:$0xff]
    %v245 = vld [vmem:[#allocation7 + $0x88] sm:$0xff]
    %v246 = vld [vmem:[#allocation7 + $0x90] sm:$0xff]
    %v247 = vld [vmem:[#allocation7 + $0x98] sm:$0xff]
    %v248 = vld [vmem:[#allocation7 + $0xa0] sm:$0xff]
    %v249 = vld [vmem:[#allocation7 + $0xa8] sm:$0xff]
    %v250 = vld [vmem:[#allocation7 + $0xb0] sm:$0xff]
    %v251 = vld [vmem:[#allocation7 + $0xb8] sm:$0xff]
    %v252 = vld [vmem:[#allocation7 + $0xc0] sm:$0xff]
    %v253 = vld [vmem:[#allocation7 + $0xc8] sm:$0xff]
    %v254 = vld [vmem:[#allocation7 + $0xd0] sm:$0xff]
    %v255 = vld [vmem:[#allocation7 + $0xd8] sm:$0xff]
    %v256 = vld [vmem:[#allocation7 + $0xe0] sm:$0xff]
    %v257 = vld [vmem:[#allocation7 + $0xe8] sm:$0xff]
    %v258 = vld [vmem:[#allocation7 + $0xf0] sm:$0xff]
    %v259 = vld [vmem:[#allocation7 + $0xf8] sm:$0xff]
    %v260 = vld [vmem:[#allocation7 + $0x100] sm:$0xff]
    %v261 = vld [vmem:[#allocation7 + $0x108] sm:$0xff]
    %v262 = vld [vmem:[#allocation7 + $0x110] sm:$0xff]
    %v263 = vld [vmem:[#allocation7 + $0x118] sm:$0xff]
    %v264 = vld [vmem:[#allocation7 + $0x120] sm:$0xff]
    %v265 = vld [vmem:[#allocation7 + $0x128] sm:$0xff]
    %v266 = vld [vmem:[#allocation7 + $0x130] sm:$0xff]
    %v267 = vld [vmem:[#allocation7 + $0x138] sm:$0xff]
    %v268 = vld [vmem:[#allocation7 + $0x140] sm:$0xff]
    %v269 = vld [vmem:[#allocation7 + $0x148] sm:$0xff]
    %v270 = vld [vmem:[#allocation7 + $0x150] sm:$0xff]
    %v271 = vld [vmem:[#allocation7 + $0x158] sm:$0xff]
    %v272 = vld [vmem:[#allocation7 + $0x160] sm:$0xff]
    %v273 = vld [vmem:[#allocation7 + $0x168] sm:$0xff]
    %v274 = vld [vmem:[#allocation7 + $0x170] sm:$0xff]
    %v275 = vld [vmem:[#allocation7 + $0x178] sm:$0xff]
    %v276 = vld [vmem:[#allocation7 + $0x180] sm:$0xff]
    %v277 = vld [vmem:[#allocation7 + $0x188] sm:$0xff]
    %v278 = vld [vmem:[#allocation7 + $0x190] sm:$0xff]
    %v279 = vld [vmem:[#allocation7 + $0x198] sm:$0xff]
    %v280 = vld [vmem:[#allocation7 + $0x1a0] sm:$0xff]
    %v281 = vld [vmem:[#allocation7 + $0x1a8] sm:$0xff]
    %v282 = vld [vmem:[#allocation7 + $0x1b0] sm:$0xff]
    %v283 = vld [vmem:[#allocation7 + $0x1b8] sm:$0xff]
    %v284 = vld [vmem:[#allocation7 + $0x1c0] sm:$0xff]
    %v285 = vld [vmem:[#allocation7 + $0x1c8] sm:$0xff]
    %v286 = vld [vmem:[#allocation7 + $0x1d0] sm:$0xff]
    %v287 = vld [vmem:[#allocation7 + $0x1d8] sm:$0xff]
    %v288 = vld [vmem:[#allocation7 + $0x1e0] sm:$0xff]
    %v289 = vld [vmem:[#allocation7 + $0x1e8] sm:$0xff]
    %v290 = vld [vmem:[#allocation7 + $0x1f0] sm:$0xff]
    %v291 = vld [vmem:[#allocation7 + $0x1f8] sm:$0xff]
    %v292 = vld [vmem:[%s4] sm:$0xf]
    %v294 = vlaneseq
    %v295 = vshrl.u32 %v294, 7
    %v296 = vsub.s32 0, %v295
    %v297 = vrot.slane %v292, %v296
    %v298 = vlaneseq
    %v299 = vshrl.u32 %v298, 7
    %v300 = vsub.s32 1, %v299
    %v301 = vrot.slane %v292, %v300
    %v302 = vlaneseq
    %v303 = vshrl.u32 %v302, 7
    %v304 = vsub.s32 2, %v303
    %v305 = vrot.slane %v292, %v304
    %v306 = vlaneseq
    %v307 = vshrl.u32 %v306, 7
    %v308 = vsub.s32 3, %v307
    %v309 = vrot.slane %v292, %v308
    %v378 = vunpack.c.l.b16 %v228
    %v379 = vunpack.c.h.b16 %v228
    %v380 = vunpack.c.l.b16 %v229
    %v381 = vunpack.c.h.b16 %v229
    %v382 = vunpack.c.l.b16 %v230
    %v383 = vunpack.c.h.b16 %v230
    %v384 = vunpack.c.l.b16 %v231
    %v385 = vunpack.c.h.b16 %v231
    %v386 = vunpack.c.l.b16 %v232
    %v387 = vunpack.c.h.b16 %v232
    %v388 = vunpack.c.l.b16 %v233
    %v389 = vunpack.c.h.b16 %v233
    %v390 = vunpack.c.l.b16 %v234
    %v391 = vunpack.c.h.b16 %v234
    %v392 = vunpack.c.l.b16 %v235
    %v393 = vunpack.c.h.b16 %v235
    %v394 = vunpack.c.l.b16 %v236
    %v395 = vunpack.c.h.b16 %v236
    %v396 = vunpack.c.l.b16 %v237
    %v397 = vunpack.c.h.b16 %v237
    %v398 = vunpack.c.l.b16 %v238
    %v399 = vunpack.c.h.b16 %v238
    %v400 = vunpack.c.l.b16 %v239
    %v401 = vunpack.c.h.b16 %v239
    %v402 = vunpack.c.l.b16 %v240
    %v403 = vunpack.c.h.b16 %v240
    %v404 = vunpack.c.l.b16 %v241
    %v405 = vunpack.c.h.b16 %v241
    %v406 = vunpack.c.l.b16 %v242
    %v407 = vunpack.c.h.b16 %v242
    %v408 = vunpack.c.l.b16 %v243
    %v409 = vunpack.c.h.b16 %v243
    %v410 = vunpack.c.l.b16 %v244
    %v411 = vunpack.c.h.b16 %v244
    %v412 = vunpack.c.l.b16 %v245
    %v413 = vunpack.c.h.b16 %v245
    %v414 = vunpack.c.l.b16 %v246
    %v415 = vunpack.c.h.b16 %v246
    %v416 = vunpack.c.l.b16 %v247
    %v417 = vunpack.c.h.b16 %v247
    %v418 = vunpack.c.l.b16 %v248
    %v419 = vunpack.c.h.b16 %v248
    %v420 = vunpack.c.l.b16 %v249
    %v421 = vunpack.c.h.b16 %v249
    %v422 = vunpack.c.l.b16 %v250
    %v423 = vunpack.c.h.b16 %v250
    %v424 = vunpack.c.l.b16 %v251
    %v425 = vunpack.c.h.b16 %v251
    %v426 = vunpack.c.l.b16 %v252
    %v427 = vunpack.c.h.b16 %v252
    %v428 = vunpack.c.l.b16 %v253
    %v429 = vunpack.c.h.b16 %v253
    %v430 = vunpack.c.l.b16 %v254
    %v431 = vunpack.c.h.b16 %v254
    %v432 = vunpack.c.l.b16 %v255
    %v433 = vunpack.c.h.b16 %v255
    %v434 = vunpack.c.l.b16 %v256
    %v435 = vunpack.c.h.b16 %v256
    %v436 = vunpack.c.l.b16 %v257
    %v437 = vunpack.c.h.b16 %v257
    %v438 = vunpack.c.l.b16 %v258
    %v439 = vunpack.c.h.b16 %v258
    %v440 = vunpack.c.l.b16 %v259
    %v441 = vunpack.c.h.b16 %v259
    %v442 = vunpack.c.l.b16 %v260
    %v443 = vunpack.c.h.b16 %v260
    %v444 = vunpack.c.l.b16 %v261
    %v445 = vunpack.c.h.b16 %v261
    %v446 = vunpack.c.l.b16 %v262
    %v447 = vunpack.c.h.b16 %v262
    %v448 = vunpack.c.l.b16 %v263
    %v449 = vunpack.c.h.b16 %v263
    %v450 = vunpack.c.l.b16 %v264
    %v451 = vunpack.c.h.b16 %v264
    %v452 = vunpack.c.l.b16 %v265
    %v453 = vunpack.c.h.b16 %v265
    %v454 = vunpack.c.l.b16 %v266
    %v455 = vunpack.c.h.b16 %v266
    %v456 = vunpack.c.l.b16 %v267
    %v457 = vunpack.c.h.b16 %v267
    %v458 = vunpack.c.l.b16 %v268
    %v459 = vunpack.c.h.b16 %v268
    %v460 = vunpack.c.l.b16 %v269
    %v461 = vunpack.c.h.b16 %v269
    %v462 = vunpack.c.l.b16 %v270
    %v463 = vunpack.c.h.b16 %v270
    %v464 = vunpack.c.l.b16 %v271
    %v465 = vunpack.c.h.b16 %v271
    %v466 = vunpack.c.l.b16 %v272
    %v467 = vunpack.c.h.b16 %v272
    %v468 = vunpack.c.l.b16 %v273
    %v469 = vunpack.c.h.b16 %v273
    %v470 = vunpack.c.l.b16 %v274
    %v471 = vunpack.c.h.b16 %v274
    %v472 = vunpack.c.l.b16 %v275
    %v473 = vunpack.c.h.b16 %v275
    %v474 = vunpack.c.l.b16 %v276
    %v475 = vunpack.c.h.b16 %v276
    %v476 = vunpack.c.l.b16 %v277
    %v477 = vunpack.c.h.b16 %v277
    %v478 = vunpack.c.l.b16 %v278
    %v479 = vunpack.c.h.b16 %v278
    %v480 = vunpack.c.l.b16 %v279
    %v481 = vunpack.c.h.b16 %v279
    %v482 = vunpack.c.l.b16 %v280
    %v483 = vunpack.c.h.b16 %v280
    %v484 = vunpack.c.l.b16 %v281
    %v485 = vunpack.c.h.b16 %v281
    %v486 = vunpack.c.l.b16 %v282
    %v487 = vunpack.c.h.b16 %v282
    %v488 = vunpack.c.l.b16 %v283
    %v489 = vunpack.c.h.b16 %v283
    %v490 = vunpack.c.l.b16 %v284
    %v491 = vunpack.c.h.b16 %v284
    %v492 = vunpack.c.l.b16 %v285
    %v493 = vunpack.c.h.b16 %v285
    %v494 = vunpack.c.l.b16 %v286
    %v495 = vunpack.c.h.b16 %v286
    %v496 = vunpack.c.l.b16 %v287
    %v497 = vunpack.c.h.b16 %v287
    %v498 = vunpack.c.l.b16 %v288
    %v499 = vunpack.c.h.b16 %v288
    %v500 = vunpack.c.l.b16 %v289
    %v501 = vunpack.c.h.b16 %v289
    %v502 = vunpack.c.l.b16 %v290
    %v503 = vunpack.c.h.b16 %v290
    %v504 = vunpack.c.l.b16 %v291
    %v505 = vunpack.c.h.b16 %v291
    %v506 = vpack.c.b16 %v382, %v378
    %v507 = vpack.c.b16 %v383, %v379
    %v508 = vpack.c.b16 %v384, %v380
    %v509 = vpack.c.b16 %v385, %v381
    %v510 = vpack.c.b16 %v390, %v386
    %v511 = vpack.c.b16 %v391, %v387
    %v512 = vpack.c.b16 %v392, %v388
    %v513 = vpack.c.b16 %v393, %v389
    %v514 = vpack.c.b16 %v398, %v394
    %v515 = vpack.c.b16 %v399, %v395
    %v516 = vpack.c.b16 %v400, %v396
    %v517 = vpack.c.b16 %v401, %v397
    %v518 = vpack.c.b16 %v406, %v402
    %v519 = vpack.c.b16 %v407, %v403
    %v520 = vpack.c.b16 %v408, %v404
    %v521 = vpack.c.b16 %v409, %v405
    %v522 = vpack.c.b16 %v414, %v410
    %v523 = vpack.c.b16 %v415, %v411
    %v524 = vpack.c.b16 %v416, %v412
    %v525 = vpack.c.b16 %v417, %v413
    %v526 = vpack.c.b16 %v422, %v418
    %v527 = vpack.c.b16 %v423, %v419
    %v528 = vpack.c.b16 %v424, %v420
    %v529 = vpack.c.b16 %v425, %v421
    %v530 = vpack.c.b16 %v430, %v426
    %v531 = vpack.c.b16 %v431, %v427
    %v532 = vpack.c.b16 %v432, %v428
    %v533 = vpack.c.b16 %v433, %v429
    %v534 = vpack.c.b16 %v438, %v434
    %v535 = vpack.c.b16 %v439, %v435
    %v536 = vpack.c.b16 %v440, %v436
    %v537 = vpack.c.b16 %v441, %v437
    %v538 = vpack.c.b16 %v446, %v442
    %v539 = vpack.c.b16 %v447, %v443
    %v540 = vpack.c.b16 %v448, %v444
    %v541 = vpack.c.b16 %v449, %v445
    %v542 = vpack.c.b16 %v454, %v450
    %v543 = vpack.c.b16 %v455, %v451
    %v544 = vpack.c.b16 %v456, %v452
    %v545 = vpack.c.b16 %v457, %v453
    %v546 = vpack.c.b16 %v462, %v458
    %v547 = vpack.c.b16 %v463, %v459
    %v548 = vpack.c.b16 %v464, %v460
    %v549 = vpack.c.b16 %v465, %v461
    %v550 = vpack.c.b16 %v470, %v466
    %v551 = vpack.c.b16 %v471, %v467
    %v552 = vpack.c.b16 %v472, %v468
    %v553 = vpack.c.b16 %v473, %v469
    %v554 = vpack.c.b16 %v478, %v474
    %v555 = vpack.c.b16 %v479, %v475
    %v556 = vpack.c.b16 %v480, %v476
    %v557 = vpack.c.b16 %v481, %v477
    %v558 = vpack.c.b16 %v486, %v482
    %v559 = vpack.c.b16 %v487, %v483
    %v560 = vpack.c.b16 %v488, %v484
    %v561 = vpack.c.b16 %v489, %v485
    %v562 = vpack.c.b16 %v494, %v490
    %v563 = vpack.c.b16 %v495, %v491
    %v564 = vpack.c.b16 %v496, %v492
    %v565 = vpack.c.b16 %v497, %v493
    %v566 = vpack.c.b16 %v502, %v498
    %v567 = vpack.c.b16 %v503, %v499
    %v568 = vpack.c.b16 %v504, %v500
    %v569 = vpack.c.b16 %v505, %v501
    %634 = vmatprep.subr.bf16.mxu0 %v507
    %635 = vmatpush1.bf16.msra.mxu0 %v506
    %636 = vmatprep.subr.bf16.mxu0 %v511
    %637 = vmatpush1.bf16.msra.mxu0 %v510
    %638 = vmatprep.subr.bf16.mxu0 %v515
    %639 = vmatpush1.bf16.msra.mxu0 %v514
    %640 = vmatprep.subr.bf16.mxu0 %v519
    %641 = vmatpush1.bf16.msra.mxu0 %v518
    %642 = vmatprep.subr.bf16.mxu0 %v523
    %643 = vmatpush1.bf16.msra.mxu0 %v522
    %644 = vmatprep.subr.bf16.mxu0 %v527
    %645 = vmatpush1.bf16.msra.mxu0 %v526
    %646 = vmatprep.subr.bf16.mxu0 %v531
    %647 = vmatpush1.bf16.msra.mxu0 %v530
    %648 = vmatprep.subr.bf16.mxu0 %v535
    %649 = vmatpush1.bf16.msra.mxu0 %v534
    %650 = vmatprep.subr.bf16.mxu0 %v539
    %651 = vmatpush1.bf16.msra.mxu0 %v538
    %652 = vmatprep.subr.bf16.mxu0 %v543
    %653 = vmatpush1.bf16.msra.mxu0 %v542
    %654 = vmatprep.subr.bf16.mxu0 %v547
    %655 = vmatpush1.bf16.msra.mxu0 %v546
    %656 = vmatprep.subr.bf16.mxu0 %v551
    %657 = vmatpush1.bf16.msra.mxu0 %v550
    %658 = vmatprep.subr.bf16.mxu0 %v555
    %659 = vmatpush1.bf16.msra.mxu0 %v554
    %660 = vmatprep.subr.bf16.mxu0 %v559
    %661 = vmatpush1.bf16.msra.mxu0 %v558
    %662 = vmatprep.subr.bf16.mxu0 %v563
    %663 = vmatpush1.bf16.msra.mxu0 %v562
    %664 = vmatprep.subr.bf16.mxu0 %v567
    %665 = vmatpush1.bf16.msra.mxu0 %v566
    %666 = vmatprep.mubr.bf16.mxu0 %v227
    %667 = vmatmul.mubr.bf16.gmra.mrb[0].mxu0 %v226
    %v668 = vpop.f32.mrb[0].mxu0
    %v669 = vadd.f32 %v297, %v668
    %v670 = vpop.f32.mrb[0].mxu0
    %v671 = vadd.f32 %v301, %v670
    %v672 = vpop.f32.mrb[0].mxu0
    %v673 = vpop.f32.mrb[0].mxu0
    %674 = vdwg.mxu0
    %675 = vmatprep.subr.bf16.mxu0 %v509
    %676 = vmatpush1.bf16.msra.mxu0 %v508
    %677 = vmatprep.subr.bf16.mxu0 %v513
    %678 = vmatpush1.bf16.msra.mxu0 %v512
    %679 = vmatprep.subr.bf16.mxu0 %v517
    %680 = vmatpush1.bf16.msra.mxu0 %v516
    %681 = vmatprep.subr.bf16.mxu0 %v521
    %682 = vmatpush1.bf16.msra.mxu0 %v520
    %683 = vmatprep.subr.bf16.mxu0 %v525
    %684 = vmatpush1.bf16.msra.mxu0 %v524
    %685 = vmatprep.subr.bf16.mxu0 %v529
    %686 = vmatpush1.bf16.msra.mxu0 %v528
    %687 = vmatprep.subr.bf16.mxu0 %v533
    %688 = vmatpush1.bf16.msra.mxu0 %v532
    %689 = vmatprep.subr.bf16.mxu0 %v537
    %690 = vmatpush1.bf16.msra.mxu0 %v536
    %691 = vmatprep.subr.bf16.mxu0 %v541
    %692 = vmatpush1.bf16.msra.mxu0 %v540
    %693 = vmatprep.subr.bf16.mxu0 %v545
    %694 = vmatpush1.bf16.msra.mxu0 %v544
    %695 = vmatprep.subr.bf16.mxu0 %v549
    %696 = vmatpush1.bf16.msra.mxu0 %v548
    %697 = vmatprep.subr.bf16.mxu0 %v553
    %698 = vmatpush1.bf16.msra.mxu0 %v552
    %699 = vmatprep.subr.bf16.mxu0 %v557
    %700 = vmatpush1.bf16.msra.mxu0 %v556
    %701 = vmatprep.subr.bf16.mxu0 %v561
    %702 = vmatpush1.bf16.msra.mxu0 %v560
    %703 = vmatprep.subr.bf16.mxu0 %v565
    %704 = vmatpush1.bf16.msra.mxu0 %v564
    %705 = vmatprep.subr.bf16.mxu0 %v569
    %706 = vmatpush1.bf16.msra.mxu0 %v568
    %707 = vmatprep.mubr.bf16.mxu0 %v227
    %708 = vmatmul.mubr.bf16.gmra.mrb[0].mxu0 %v226
    %v709 = vpop.f32.mrb[0].mxu0
    %v710 = vadd.f32 %v305, %v709
    %v711 = vpop.f32.mrb[0].mxu0
    %v712 = vadd.f32 %v309, %v711
    %v713 = vpop.f32.mrb[0].mxu0
    %v714 = vpop.f32.mrb[0].mxu0
    %715 = vdwg.mxu0
    %v716 = vmax.f32 %v669, 0.0
    %v717 = vmax.f32 %v671, 0.0
    %v718 = vmax.f32 %v710, 0.0
    %v719 = vmax.f32 %v712, 0.0
    %v720 = vpack.c.bf16 %v716, %v716
    %v721 = vpack.c.bf16 %v717, %v717
    %v722 = vpack.c.bf16 %v718, %v718
    %v723 = vpack.c.bf16 %v719, %v719
    %v724 = vld [vmem:[#allocation8] sm:$0xff]
    %v725 = vld [vmem:[#allocation8 + $0x8] sm:$0xff]
    %v726 = vld [vmem:[#allocation8 + $0x10] sm:$0xff]
    %v727 = vld [vmem:[#allocation8 + $0x18] sm:$0xff]
    %v728 = vld [vmem:[#allocation8 + $0x20] sm:$0xff]
    %v729 = vld [vmem:[#allocation8 + $0x28] sm:$0xff]
    %v730 = vld [vmem:[#allocation8 + $0x30] sm:$0xff]
    %v731 = vld [vmem:[#allocation8 + $0x38] sm:$0xff]
    %v732 = vld [vmem:[#allocation8 + $0x40] sm:$0xff]
    %v733 = vld [vmem:[#allocation8 + $0x48] sm:$0xff]
    %v734 = vld [vmem:[#allocation8 + $0x50] sm:$0xff]
    %v735 = vld [vmem:[#allocation8 + $0x58] sm:$0xff]
    %v736 = vld [vmem:[#allocation8 + $0x60] sm:$0xff]
    %v737 = vld [vmem:[#allocation8 + $0x68] sm:$0xff]
    %v738 = vld [vmem:[#allocation8 + $0x70] sm:$0xff]
    %v739 = vld [vmem:[#allocation8 + $0x78] sm:$0xff]
    %v740 = vld [vmem:[#allocation8 + $0x80] sm:$0xff]
    %v741 = vld [vmem:[#allocation8 + $0x88] sm:$0xff]
    %v742 = vld [vmem:[#allocation8 + $0x90] sm:$0xff]
    %v743 = vld [vmem:[#allocation8 + $0x98] sm:$0xff]
    %v744 = vld [vmem:[#allocation8 + $0xa0] sm:$0xff]
    %v745 = vld [vmem:[#allocation8 + $0xa8] sm:$0xff]
    %v746 = vld [vmem:[#allocation8 + $0xb0] sm:$0xff]
    %v747 = vld [vmem:[#allocation8 + $0xb8] sm:$0xff]
    %v748 = vld [vmem:[#allocation8 + $0xc0] sm:$0xff]
    %v749 = vld [vmem:[#allocation8 + $0xc8] sm:$0xff]
    %v750 = vld [vmem:[#allocation8 + $0xd0] sm:$0xff]
    %v751 = vld [vmem:[#allocation8 + $0xd8] sm:$0xff]
    %v752 = vld [vmem:[#allocation8 + $0xe0] sm:$0xff]
    %v753 = vld [vmem:[#allocation8 + $0xe8] sm:$0xff]
    %v754 = vld [vmem:[#allocation8 + $0xf0] sm:$0xff]
    %v755 = vld [vmem:[#allocation8 + $0xf8] sm:$0xff]
    %v756 = vld [vmem:[#allocation8 + $0x100] sm:$0xff]
    %v757 = vld [vmem:[#allocation8 + $0x108] sm:$0xff]
    %v758 = vld [vmem:[#allocation8 + $0x110] sm:$0xff]
    %v759 = vld [vmem:[#allocation8 + $0x118] sm:$0xff]
    %v760 = vld [vmem:[#allocation8 + $0x120] sm:$0xff]
    %v761 = vld [vmem:[#allocation8 + $0x128] sm:$0xff]
    %v762 = vld [vmem:[#allocation8 + $0x130] sm:$0xff]
    %v763 = vld [vmem:[#allocation8 + $0x138] sm:$0xff]
    %v764 = vld [vmem:[#allocation8 + $0x140] sm:$0xff]
    %v765 = vld [vmem:[#allocation8 + $0x148] sm:$0xff]
    %v766 = vld [vmem:[#allocation8 + $0x150] sm:$0xff]
    %v767 = vld [vmem:[#allocation8 + $0x158] sm:$0xff]
    %v768 = vld [vmem:[#allocation8 + $0x160] sm:$0xff]
    %v769 = vld [vmem:[#allocation8 + $0x168] sm:$0xff]
    %v770 = vld [vmem:[#allocation8 + $0x170] sm:$0xff]
    %v771 = vld [vmem:[#allocation8 + $0x178] sm:$0xff]
    %v772 = vld [vmem:[#allocation8 + $0x180] sm:$0xff]
    %v773 = vld [vmem:[#allocation8 + $0x188] sm:$0xff]
    %v774 = vld [vmem:[#allocation8 + $0x190] sm:$0xff]
    %v775 = vld [vmem:[#allocation8 + $0x198] sm:$0xff]
    %v776 = vld [vmem:[#allocation8 + $0x1a0] sm:$0xff]
    %v777 = vld [vmem:[#allocation8 + $0x1a8] sm:$0xff]
    %v778 = vld [vmem:[#allocation8 + $0x1b0] sm:$0xff]
    %v779 = vld [vmem:[#allocation8 + $0x1b8] sm:$0xff]
    %v780 = vld [vmem:[#allocation8 + $0x1c0] sm:$0xff]
    %v781 = vld [vmem:[#allocation8 + $0x1c8] sm:$0xff]
    %v782 = vld [vmem:[#allocation8 + $0x1d0] sm:$0xff]
    %v783 = vld [vmem:[#allocation8 + $0x1d8] sm:$0xff]
    %v784 = vld [vmem:[#allocation8 + $0x1e0] sm:$0xff]
    %v785 = vld [vmem:[#allocation8 + $0x1e8] sm:$0xff]
    %v786 = vld [vmem:[#allocation8 + $0x1f0] sm:$0xff]
    %v787 = vld [vmem:[#allocation8 + $0x1f8] sm:$0xff]
    %v788 = vld [vmem:[#allocation8 + $0x200] sm:$0xff]
    %v789 = vld [vmem:[#allocation8 + $0x208] sm:$0xff]
    %v790 = vld [vmem:[#allocation8 + $0x210] sm:$0xff]
    %v791 = vld [vmem:[#allocation8 + $0x218] sm:$0xff]
    %v792 = vld [vmem:[#allocation8 + $0x220] sm:$0xff]
    %v793 = vld [vmem:[#allocation8 + $0x228] sm:$0xff]
    %v794 = vld [vmem:[#allocation8 + $0x230] sm:$0xff]
    %v795 = vld [vmem:[#allocation8 + $0x238] sm:$0xff]
    %v796 = vld [vmem:[#allocation8 + $0x240] sm:$0xff]
    %v797 = vld [vmem:[#allocation8 + $0x248] sm:$0xff]
    %v798 = vld [vmem:[#allocation8 + $0x250] sm:$0xff]
    %v799 = vld [vmem:[#allocation8 + $0x258] sm:$0xff]
    %v800 = vld [vmem:[#allocation8 + $0x260] sm:$0xff]
    %v801 = vld [vmem:[#allocation8 + $0x268] sm:$0xff]
    %v802 = vld [vmem:[#allocation8 + $0x270] sm:$0xff]
    %v803 = vld [vmem:[#allocation8 + $0x278] sm:$0xff]
    %v804 = vld [vmem:[#allocation8 + $0x280] sm:$0xff]
    %v805 = vld [vmem:[#allocation8 + $0x288] sm:$0xff]
    %v806 = vld [vmem:[#allocation8 + $0x290] sm:$0xff]
    %v807 = vld [vmem:[#allocation8 + $0x298] sm:$0xff]
    %v808 = vld [vmem:[#allocation8 + $0x2a0] sm:$0xff]
    %v809 = vld [vmem:[#allocation8 + $0x2a8] sm:$0xff]
    %v810 = vld [vmem:[#allocation8 + $0x2b0] sm:$0xff]
    %v811 = vld [vmem:[#allocation8 + $0x2b8] sm:$0xff]
    %v812 = vld [vmem:[#allocation8 + $0x2c0] sm:$0xff]
    %v813 = vld [vmem:[#allocation8 + $0x2c8] sm:$0xff]
    %v814 = vld [vmem:[#allocation8 + $0x2d0] sm:$0xff]
    %v815 = vld [vmem:[#allocation8 + $0x2d8] sm:$0xff]
    %v816 = vld [vmem:[#allocation8 + $0x2e0] sm:$0xff]
    %v817 = vld [vmem:[#allocation8 + $0x2e8] sm:$0xff]
    %v818 = vld [vmem:[#allocation8 + $0x2f0] sm:$0xff]
    %v819 = vld [vmem:[#allocation8 + $0x2f8] sm:$0xff]
    %v820 = vld [vmem:[#allocation8 + $0x300] sm:$0xff]
    %v821 = vld [vmem:[#allocation8 + $0x308] sm:$0xff]
    %v822 = vld [vmem:[#allocation8 + $0x310] sm:$0xff]
    %v823 = vld [vmem:[#allocation8 + $0x318] sm:$0xff]
    %v824 = vld [vmem:[#allocation8 + $0x320] sm:$0xff]
    %v825 = vld [vmem:[#allocation8 + $0x328] sm:$0xff]
    %v826 = vld [vmem:[#allocation8 + $0x330] sm:$0xff]
    %v827 = vld [vmem:[#allocation8 + $0x338] sm:$0xff]
    %v828 = vld [vmem:[#allocation8 + $0x340] sm:$0xff]
    %v829 = vld [vmem:[#allocation8 + $0x348] sm:$0xff]
    %v830 = vld [vmem:[#allocation8 + $0x350] sm:$0xff]
    %v831 = vld [vmem:[#allocation8 + $0x358] sm:$0xff]
    %v832 = vld [vmem:[#allocation8 + $0x360] sm:$0xff]
    %v833 = vld [vmem:[#allocation8 + $0x368] sm:$0xff]
    %v834 = vld [vmem:[#allocation8 + $0x370] sm:$0xff]
    %v835 = vld [vmem:[#allocation8 + $0x378] sm:$0xff]
    %v836 = vld [vmem:[#allocation8 + $0x380] sm:$0xff]
    %v837 = vld [vmem:[#allocation8 + $0x388] sm:$0xff]
    %v838 = vld [vmem:[#allocation8 + $0x390] sm:$0xff]
    %v839 = vld [vmem:[#allocation8 + $0x398] sm:$0xff]
    %v840 = vld [vmem:[#allocation8 + $0x3a0] sm:$0xff]
    %v841 = vld [vmem:[#allocation8 + $0x3a8] sm:$0xff]
    %v842 = vld [vmem:[#allocation8 + $0x3b0] sm:$0xff]
    %v843 = vld [vmem:[#allocation8 + $0x3b8] sm:$0xff]
    %v844 = vld [vmem:[#allocation8 + $0x3c0] sm:$0xff]
    %v845 = vld [vmem:[#allocation8 + $0x3c8] sm:$0xff]
    %v846 = vld [vmem:[#allocation8 + $0x3d0] sm:$0xff]
    %v847 = vld [vmem:[#allocation8 + $0x3d8] sm:$0xff]
    %v848 = vld [vmem:[#allocation8 + $0x3e0] sm:$0xff]
    %v849 = vld [vmem:[#allocation8 + $0x3e8] sm:$0xff]
    %v850 = vld [vmem:[#allocation8 + $0x3f0] sm:$0xff]
    %v851 = vld [vmem:[#allocation8 + $0x3f8] sm:$0xff]
    %v852 = vld [vmem:[#allocation8 + $0x400] sm:$0xff]
    %v853 = vld [vmem:[#allocation8 + $0x408] sm:$0xff]
    %v854 = vld [vmem:[#allocation8 + $0x410] sm:$0xff]
    %v855 = vld [vmem:[#allocation8 + $0x418] sm:$0xff]
    %v856 = vld [vmem:[#allocation8 + $0x420] sm:$0xff]
    %v857 = vld [vmem:[#allocation8 + $0x428] sm:$0xff]
    %v858 = vld [vmem:[#allocation8 + $0x430] sm:$0xff]
    %v859 = vld [vmem:[#allocation8 + $0x438] sm:$0xff]
    %v860 = vld [vmem:[#allocation8 + $0x440] sm:$0xff]
    %v861 = vld [vmem:[#allocation8 + $0x448] sm:$0xff]
    %v862 = vld [vmem:[#allocation8 + $0x450] sm:$0xff]
    %v863 = vld [vmem:[#allocation8 + $0x458] sm:$0xff]
    %v864 = vld [vmem:[#allocation8 + $0x460] sm:$0xff]
    %v865 = vld [vmem:[#allocation8 + $0x468] sm:$0xff]
    %v866 = vld [vmem:[#allocation8 + $0x470] sm:$0xff]
    %v867 = vld [vmem:[#allocation8 + $0x478] sm:$0xff]
    %v868 = vld [vmem:[#allocation8 + $0x480] sm:$0xff]
    %v869 = vld [vmem:[#allocation8 + $0x488] sm:$0xff]
    %v870 = vld [vmem:[#allocation8 + $0x490] sm:$0xff]
    %v871 = vld [vmem:[#allocation8 + $0x498] sm:$0xff]
    %v872 = vld [vmem:[#allocation8 + $0x4a0] sm:$0xff]
    %v873 = vld [vmem:[#allocation8 + $0x4a8] sm:$0xff]
    %v874 = vld [vmem:[#allocation8 + $0x4b0] sm:$0xff]
    %v875 = vld [vmem:[#allocation8 + $0x4b8] sm:$0xff]
    %v876 = vld [vmem:[#allocation8 + $0x4c0] sm:$0xff]
    %v877 = vld [vmem:[#allocation8 + $0x4c8] sm:$0xff]
    %v878 = vld [vmem:[#allocation8 + $0x4d0] sm:$0xff]
    %v879 = vld [vmem:[#allocation8 + $0x4d8] sm:$0xff]
    %v880 = vld [vmem:[#allocation8 + $0x4e0] sm:$0xff]
    %v881 = vld [vmem:[#allocation8 + $0x4e8] sm:$0xff]
    %v882 = vld [vmem:[#allocation8 + $0x4f0] sm:$0xff]
    %v883 = vld [vmem:[#allocation8 + $0x4f8] sm:$0xff]
    %v884 = vld [vmem:[#allocation8 + $0x500] sm:$0xff]
    %v885 = vld [vmem:[#allocation8 + $0x508] sm:$0xff]
    %v886 = vld [vmem:[#allocation8 + $0x510] sm:$0xff]
    %v887 = vld [vmem:[#allocation8 + $0x518] sm:$0xff]
    %v888 = vld [vmem:[#allocation8 + $0x520] sm:$0xff]
    %v889 = vld [vmem:[#allocation8 + $0x528] sm:$0xff]
    %v890 = vld [vmem:[#allocation8 + $0x530] sm:$0xff]
    %v891 = vld [vmem:[#allocation8 + $0x538] sm:$0xff]
    %v892 = vld [vmem:[#allocation8 + $0x540] sm:$0xff]
    %v893 = vld [vmem:[#allocation8 + $0x548] sm:$0xff]
    %v894 = vld [vmem:[#allocation8 + $0x550] sm:$0xff]
    %v895 = vld [vmem:[#allocation8 + $0x558] sm:$0xff]
    %v896 = vld [vmem:[#allocation8 + $0x560] sm:$0xff]
    %v897 = vld [vmem:[#allocation8 + $0x568] sm:$0xff]
    %v898 = vld [vmem:[#allocation8 + $0x570] sm:$0xff]
    %v899 = vld [vmem:[#allocation8 + $0x578] sm:$0xff]
    %v900 = vld [vmem:[#allocation8 + $0x580] sm:$0xff]
    %v901 = vld [vmem:[#allocation8 + $0x588] sm:$0xff]
    %v902 = vld [vmem:[#allocation8 + $0x590] sm:$0xff]
    %v903 = vld [vmem:[#allocation8 + $0x598] sm:$0xff]
    %v904 = vld [vmem:[#allocation8 + $0x5a0] sm:$0xff]
    %v905 = vld [vmem:[#allocation8 + $0x5a8] sm:$0xff]
    %v906 = vld [vmem:[#allocation8 + $0x5b0] sm:$0xff]
    %v907 = vld [vmem:[#allocation8 + $0x5b8] sm:$0xff]
    %v908 = vld [vmem:[#allocation8 + $0x5c0] sm:$0xff]
    %v909 = vld [vmem:[#allocation8 + $0x5c8] sm:$0xff]
    %v910 = vld [vmem:[#allocation8 + $0x5d0] sm:$0xff]
    %v911 = vld [vmem:[#allocation8 + $0x5d8] sm:$0xff]
    %v912 = vld [vmem:[#allocation8 + $0x5e0] sm:$0xff]
    %v913 = vld [vmem:[#allocation8 + $0x5e8] sm:$0xff]
    %v914 = vld [vmem:[#allocation8 + $0x5f0] sm:$0xff]
    %v915 = vld [vmem:[#allocation8 + $0x5f8] sm:$0xff]
    %v916 = vld [vmem:[#allocation8 + $0x600] sm:$0xff]
    %v917 = vld [vmem:[#allocation8 + $0x608] sm:$0xff]
    %v918 = vld [vmem:[#allocation8 + $0x610] sm:$0xff]
    %v919 = vld [vmem:[#allocation8 + $0x618] sm:$0xff]
    %v920 = vld [vmem:[#allocation8 + $0x620] sm:$0xff]
    %v921 = vld [vmem:[#allocation8 + $0x628] sm:$0xff]
    %v922 = vld [vmem:[#allocation8 + $0x630] sm:$0xff]
    %v923 = vld [vmem:[#allocation8 + $0x638] sm:$0xff]
    %v924 = vld [vmem:[#allocation8 + $0x640] sm:$0xff]
    %v925 = vld [vmem:[#allocation8 + $0x648] sm:$0xff]
    %v926 = vld [vmem:[#allocation8 + $0x650] sm:$0xff]
    %v927 = vld [vmem:[#allocation8 + $0x658] sm:$0xff]
    %v928 = vld [vmem:[#allocation8 + $0x660] sm:$0xff]
    %v929 = vld [vmem:[#allocation8 + $0x668] sm:$0xff]
    %v930 = vld [vmem:[#allocation8 + $0x670] sm:$0xff]
    %v931 = vld [vmem:[#allocation8 + $0x678] sm:$0xff]
    %v932 = vld [vmem:[#allocation8 + $0x680] sm:$0xff]
    %v933 = vld [vmem:[#allocation8 + $0x688] sm:$0xff]
    %v934 = vld [vmem:[#allocation8 + $0x690] sm:$0xff]
    %v935 = vld [vmem:[#allocation8 + $0x698] sm:$0xff]
    %v936 = vld [vmem:[#allocation8 + $0x6a0] sm:$0xff]
    %v937 = vld [vmem:[#allocation8 + $0x6a8] sm:$0xff]
    %v938 = vld [vmem:[#allocation8 + $0x6b0] sm:$0xff]
    %v939 = vld [vmem:[#allocation8 + $0x6b8] sm:$0xff]
    %v940 = vld [vmem:[#allocation8 + $0x6c0] sm:$0xff]
    %v941 = vld [vmem:[#allocation8 + $0x6c8] sm:$0xff]
    %v942 = vld [vmem:[#allocation8 + $0x6d0] sm:$0xff]
    %v943 = vld [vmem:[#allocation8 + $0x6d8] sm:$0xff]
    %v944 = vld [vmem:[#allocation8 + $0x6e0] sm:$0xff]
    %v945 = vld [vmem:[#allocation8 + $0x6e8] sm:$0xff]
    %v946 = vld [vmem:[#allocation8 + $0x6f0] sm:$0xff]
    %v947 = vld [vmem:[#allocation8 + $0x6f8] sm:$0xff]
    %v948 = vld [vmem:[#allocation8 + $0x700] sm:$0xff]
    %v949 = vld [vmem:[#allocation8 + $0x708] sm:$0xff]
    %v950 = vld [vmem:[#allocation8 + $0x710] sm:$0xff]
    %v951 = vld [vmem:[#allocation8 + $0x718] sm:$0xff]
    %v952 = vld [vmem:[#allocation8 + $0x720] sm:$0xff]
    %v953 = vld [vmem:[#allocation8 + $0x728] sm:$0xff]
    %v954 = vld [vmem:[#allocation8 + $0x730] sm:$0xff]
    %v955 = vld [vmem:[#allocation8 + $0x738] sm:$0xff]
    %v956 = vld [vmem:[#allocation8 + $0x740] sm:$0xff]
    %v957 = vld [vmem:[#allocation8 + $0x748] sm:$0xff]
    %v958 = vld [vmem:[#allocation8 + $0x750] sm:$0xff]
    %v959 = vld [vmem:[#allocation8 + $0x758] sm:$0xff]
    %v960 = vld [vmem:[#allocation8 + $0x760] sm:$0xff]
    %v961 = vld [vmem:[#allocation8 + $0x768] sm:$0xff]
    %v962 = vld [vmem:[#allocation8 + $0x770] sm:$0xff]
    %v963 = vld [vmem:[#allocation8 + $0x778] sm:$0xff]
    %v964 = vld [vmem:[#allocation8 + $0x780] sm:$0xff]
    %v965 = vld [vmem:[#allocation8 + $0x788] sm:$0xff]
    %v966 = vld [vmem:[#allocation8 + $0x790] sm:$0xff]
    %v967 = vld [vmem:[#allocation8 + $0x798] sm:$0xff]
    %v968 = vld [vmem:[#allocation8 + $0x7a0] sm:$0xff]
    %v969 = vld [vmem:[#allocation8 + $0x7a8] sm:$0xff]
    %v970 = vld [vmem:[#allocation8 + $0x7b0] sm:$0xff]
    %v971 = vld [vmem:[#allocation8 + $0x7b8] sm:$0xff]
    %v972 = vld [vmem:[#allocation8 + $0x7c0] sm:$0xff]
    %v973 = vld [vmem:[#allocation8 + $0x7c8] sm:$0xff]
    %v974 = vld [vmem:[#allocation8 + $0x7d0] sm:$0xff]
    %v975 = vld [vmem:[#allocation8 + $0x7d8] sm:$0xff]
    %v976 = vld [vmem:[#allocation8 + $0x7e0] sm:$0xff]
    %v977 = vld [vmem:[#allocation8 + $0x7e8] sm:$0xff]
    %v978 = vld [vmem:[#allocation8 + $0x7f0] sm:$0xff]
    %v979 = vld [vmem:[#allocation8 + $0x7f8] sm:$0xff]
    %v980 = vld [vmem:[%s6] sm:$0xff]
    %v982 = vlaneseq
    %v983 = vshrl.u32 %v982, 7
    %v984 = vsub.s32 0, %v983
    %v985 = vrot.slane %v980, %v984
    %v986 = vlaneseq
    %v987 = vshrl.u32 %v986, 7
    %v988 = vsub.s32 1, %v987
    %v989 = vrot.slane %v980, %v988
    %v990 = vlaneseq
    %v991 = vshrl.u32 %v990, 7
    %v992 = vsub.s32 2, %v991
    %v993 = vrot.slane %v980, %v992
    %v994 = vlaneseq
    %v995 = vshrl.u32 %v994, 7
    %v996 = vsub.s32 3, %v995
    %v997 = vrot.slane %v980, %v996
    %v998 = vlaneseq
    %v999 = vshrl.u32 %v998, 7
    %v1000 = vsub.s32 4, %v999
    %v1001 = vrot.slane %v980, %v1000
    %v1002 = vlaneseq
    %v1003 = vshrl.u32 %v1002, 7
    %v1004 = vsub.s32 5, %v1003
    %v1005 = vrot.slane %v980, %v1004
    %v1006 = vlaneseq
    %v1007 = vshrl.u32 %v1006, 7
    %v1008 = vsub.s32 6, %v1007
    %v1009 = vrot.slane %v980, %v1008
    %v1010 = vlaneseq
    %v1011 = vshrl.u32 %v1010, 7
    %v1012 = vsub.s32 7, %v1011
    %v1013 = vrot.slane %v980, %v1012
    %v1278 = vunpack.c.l.b16 %v724
    %v1279 = vunpack.c.h.b16 %v724
    %v1280 = vunpack.c.l.b16 %v725
    %v1281 = vunpack.c.h.b16 %v725
    %v1282 = vunpack.c.l.b16 %v726
    %v1283 = vunpack.c.h.b16 %v726
    %v1284 = vunpack.c.l.b16 %v727
    %v1285 = vunpack.c.h.b16 %v727
    %v1286 = vunpack.c.l.b16 %v728
    %v1287 = vunpack.c.h.b16 %v728
    %v1288 = vunpack.c.l.b16 %v729
    %v1289 = vunpack.c.h.b16 %v729
    %v1290 = vunpack.c.l.b16 %v730
    %v1291 = vunpack.c.h.b16 %v730
    %v1292 = vunpack.c.l.b16 %v731
    %v1293 = vunpack.c.h.b16 %v731
    %v1294 = vunpack.c.l.b16 %v732
    %v1295 = vunpack.c.h.b16 %v732
    %v1296 = vunpack.c.l.b16 %v733
    %v1297 = vunpack.c.h.b16 %v733
    %v1298 = vunpack.c.l.b16 %v734
    %v1299 = vunpack.c.h.b16 %v734
    %v1300 = vunpack.c.l.b16 %v735
    %v1301 = vunpack.c.h.b16 %v735
    %v1302 = vunpack.c.l.b16 %v736
    %v1303 = vunpack.c.h.b16 %v736
    %v1304 = vunpack.c.l.b16 %v737
    %v1305 = vunpack.c.h.b16 %v737
    %v1306 = vunpack.c.l.b16 %v738
    %v1307 = vunpack.c.h.b16 %v738
    %v1308 = vunpack.c.l.b16 %v739
    %v1309 = vunpack.c.h.b16 %v739
    %v1310 = vunpack.c.l.b16 %v740
    %v1311 = vunpack.c.h.b16 %v740
    %v1312 = vunpack.c.l.b16 %v741
    %v1313 = vunpack.c.h.b16 %v741
    %v1314 = vunpack.c.l.b16 %v742
    %v1315 = vunpack.c.h.b16 %v742
    %v1316 = vunpack.c.l.b16 %v743
    %v1317 = vunpack.c.h.b16 %v743
    %v1318 = vunpack.c.l.b16 %v744
    %v1319 = vunpack.c.h.b16 %v744
    %v1320 = vunpack.c.l.b16 %v745
    %v1321 = vunpack.c.h.b16 %v745
    %v1322 = vunpack.c.l.b16 %v746
    %v1323 = vunpack.c.h.b16 %v746
    %v1324 = vunpack.c.l.b16 %v747
    %v1325 = vunpack.c.h.b16 %v747
    %v1326 = vunpack.c.l.b16 %v748
    %v1327 = vunpack.c.h.b16 %v748
    %v1328 = vunpack.c.l.b16 %v749
    %v1329 = vunpack.c.h.b16 %v749
    %v1330 = vunpack.c.l.b16 %v750
    %v1331 = vunpack.c.h.b16 %v750
    %v1332 = vunpack.c.l.b16 %v751
    %v1333 = vunpack.c.h.b16 %v751
    %v1334 = vunpack.c.l.b16 %v752
    %v1335 = vunpack.c.h.b16 %v752
    %v1336 = vunpack.c.l.b16 %v753
    %v1337 = vunpack.c.h.b16 %v753
    %v1338 = vunpack.c.l.b16 %v754
    %v1339 = vunpack.c.h.b16 %v754
    %v1340 = vunpack.c.l.b16 %v755
    %v1341 = vunpack.c.h.b16 %v755
    %v1342 = vunpack.c.l.b16 %v756
    %v1343 = vunpack.c.h.b16 %v756
    %v1344 = vunpack.c.l.b16 %v757
    %v1345 = vunpack.c.h.b16 %v757
    %v1346 = vunpack.c.l.b16 %v758
    %v1347 = vunpack.c.h.b16 %v758
    %v1348 = vunpack.c.l.b16 %v759
    %v1349 = vunpack.c.h.b16 %v759
    %v1350 = vunpack.c.l.b16 %v760
    %v1351 = vunpack.c.h.b16 %v760
    %v1352 = vunpack.c.l.b16 %v761
    %v1353 = vunpack.c.h.b16 %v761
    %v1354 = vunpack.c.l.b16 %v762
    %v1355 = vunpack.c.h.b16 %v762
    %v1356 = vunpack.c.l.b16 %v763
    %v1357 = vunpack.c.h.b16 %v763
    %v1358 = vunpack.c.l.b16 %v764
    %v1359 = vunpack.c.h.b16 %v764
    %v1360 = vunpack.c.l.b16 %v765
    %v1361 = vunpack.c.h.b16 %v765
    %v1362 = vunpack.c.l.b16 %v766
    %v1363 = vunpack.c.h.b16 %v766
    %v1364 = vunpack.c.l.b16 %v767
    %v1365 = vunpack.c.h.b16 %v767
    %v1366 = vunpack.c.l.b16 %v768
    %v1367 = vunpack.c.h.b16 %v768
    %v1368 = vunpack.c.l.b16 %v769
    %v1369 = vunpack.c.h.b16 %v769
    %v1370 = vunpack.c.l.b16 %v770
    %v1371 = vunpack.c.h.b16 %v770
    %v1372 = vunpack.c.l.b16 %v771
    %v1373 = vunpack.c.h.b16 %v771
    %v1374 = vunpack.c.l.b16 %v772
    %v1375 = vunpack.c.h.b16 %v772
    %v1376 = vunpack.c.l.b16 %v773
    %v1377 = vunpack.c.h.b16 %v773
    %v1378 = vunpack.c.l.b16 %v774
    %v1379 = vunpack.c.h.b16 %v774
    %v1380 = vunpack.c.l.b16 %v775
    %v1381 = vunpack.c.h.b16 %v775
    %v1382 = vunpack.c.l.b16 %v776
    %v1383 = vunpack.c.h.b16 %v776
    %v1384 = vunpack.c.l.b16 %v777
    %v1385 = vunpack.c.h.b16 %v777
    %v1386 = vunpack.c.l.b16 %v778
    %v1387 = vunpack.c.h.b16 %v778
    %v1388 = vunpack.c.l.b16 %v779
    %v1389 = vunpack.c.h.b16 %v779
    %v1390 = vunpack.c.l.b16 %v780
    %v1391 = vunpack.c.h.b16 %v780
    %v1392 = vunpack.c.l.b16 %v781
    %v1393 = vunpack.c.h.b16 %v781
    %v1394 = vunpack.c.l.b16 %v782
    %v1395 = vunpack.c.h.b16 %v782
    %v1396 = vunpack.c.l.b16 %v783
    %v1397 = vunpack.c.h.b16 %v783
    %v1398 = vunpack.c.l.b16 %v784
    %v1399 = vunpack.c.h.b16 %v784
    %v1400 = vunpack.c.l.b16 %v785
    %v1401 = vunpack.c.h.b16 %v785
    %v1402 = vunpack.c.l.b16 %v786
    %v1403 = vunpack.c.h.b16 %v786
    %v1404 = vunpack.c.l.b16 %v787
    %v1405 = vunpack.c.h.b16 %v787
    %v1406 = vunpack.c.l.b16 %v788
    %v1407 = vunpack.c.h.b16 %v788
    %v1408 = vunpack.c.l.b16 %v789
    %v1409 = vunpack.c.h.b16 %v789
    %v1410 = vunpack.c.l.b16 %v790
    %v1411 = vunpack.c.h.b16 %v790
    %v1412 = vunpack.c.l.b16 %v791
    %v1413 = vunpack.c.h.b16 %v791
    %v1414 = vunpack.c.l.b16 %v792
    %v1415 = vunpack.c.h.b16 %v792
    %v1416 = vunpack.c.l.b16 %v793
    %v1417 = vunpack.c.h.b16 %v793
    %v1418 = vunpack.c.l.b16 %v794
    %v1419 = vunpack.c.h.b16 %v794
    %v1420 = vunpack.c.l.b16 %v795
    %v1421 = vunpack.c.h.b16 %v795
    %v1422 = vunpack.c.l.b16 %v796
    %v1423 = vunpack.c.h.b16 %v796
    %v1424 = vunpack.c.l.b16 %v797
    %v1425 = vunpack.c.h.b16 %v797
    %v1426 = vunpack.c.l.b16 %v798
    %v1427 = vunpack.c.h.b16 %v798
    %v1428 = vunpack.c.l.b16 %v799
    %v1429 = vunpack.c.h.b16 %v799
    %v1430 = vunpack.c.l.b16 %v800
    %v1431 = vunpack.c.h.b16 %v800
    %v1432 = vunpack.c.l.b16 %v801
    %v1433 = vunpack.c.h.b16 %v801
    %v1434 = vunpack.c.l.b16 %v802
    %v1435 = vunpack.c.h.b16 %v802
    %v1436 = vunpack.c.l.b16 %v803
    %v1437 = vunpack.c.h.b16 %v803
    %v1438 = vunpack.c.l.b16 %v804
    %v1439 = vunpack.c.h.b16 %v804
    %v1440 = vunpack.c.l.b16 %v805
    %v1441 = vunpack.c.h.b16 %v805
    %v1442 = vunpack.c.l.b16 %v806
    %v1443 = vunpack.c.h.b16 %v806
    %v1444 = vunpack.c.l.b16 %v807
    %v1445 = vunpack.c.h.b16 %v807
    %v1446 = vunpack.c.l.b16 %v808
    %v1447 = vunpack.c.h.b16 %v808
    %v1448 = vunpack.c.l.b16 %v809
    %v1449 = vunpack.c.h.b16 %v809
    %v1450 = vunpack.c.l.b16 %v810
    %v1451 = vunpack.c.h.b16 %v810
    %v1452 = vunpack.c.l.b16 %v811
    %v1453 = vunpack.c.h.b16 %v811
    %v1454 = vunpack.c.l.b16 %v812
    %v1455 = vunpack.c.h.b16 %v812
    %v1456 = vunpack.c.l.b16 %v813
    %v1457 = vunpack.c.h.b16 %v813
    %v1458 = vunpack.c.l.b16 %v814
    %v1459 = vunpack.c.h.b16 %v814
    %v1460 = vunpack.c.l.b16 %v815
    %v1461 = vunpack.c.h.b16 %v815
    %v1462 = vunpack.c.l.b16 %v816
    %v1463 = vunpack.c.h.b16 %v816
    %v1464 = vunpack.c.l.b16 %v817
    %v1465 = vunpack.c.h.b16 %v817
    %v1466 = vunpack.c.l.b16 %v818
    %v1467 = vunpack.c.h.b16 %v818
    %v1468 = vunpack.c.l.b16 %v819
    %v1469 = vunpack.c.h.b16 %v819
    %v1470 = vunpack.c.l.b16 %v820
    %v1471 = vunpack.c.h.b16 %v820
    %v1472 = vunpack.c.l.b16 %v821
    %v1473 = vunpack.c.h.b16 %v821
    %v1474 = vunpack.c.l.b16 %v822
    %v1475 = vunpack.c.h.b16 %v822
    %v1476 = vunpack.c.l.b16 %v823
    %v1477 = vunpack.c.h.b16 %v823
    %v1478 = vunpack.c.l.b16 %v824
    %v1479 = vunpack.c.h.b16 %v824
    %v1480 = vunpack.c.l.b16 %v825
    %v1481 = vunpack.c.h.b16 %v825
    %v1482 = vunpack.c.l.b16 %v826
    %v1483 = vunpack.c.h.b16 %v826
    %v1484 = vunpack.c.l.b16 %v827
    %v1485 = vunpack.c.h.b16 %v827
    %v1486 = vunpack.c.l.b16 %v828
    %v1487 = vunpack.c.h.b16 %v828
    %v1488 = vunpack.c.l.b16 %v829
    %v1489 = vunpack.c.h.b16 %v829
    %v1490 = vunpack.c.l.b16 %v830
    %v1491 = vunpack.c.h.b16 %v830
    %v1492 = vunpack.c.l.b16 %v831
    %v1493 = vunpack.c.h.b16 %v831
    %v1494 = vunpack.c.l.b16 %v832
    %v1495 = vunpack.c.h.b16 %v832
    %v1496 = vunpack.c.l.b16 %v833
    %v1497 = vunpack.c.h.b16 %v833
    %v1498 = vunpack.c.l.b16 %v834
    %v1499 = vunpack.c.h.b16 %v834
    %v1500 = vunpack.c.l.b16 %v835
    %v1501 = vunpack.c.h.b16 %v835
    %v1502 = vunpack.c.l.b16 %v836
    %v1503 = vunpack.c.h.b16 %v836
    %v1504 = vunpack.c.l.b16 %v837
    %v1505 = vunpack.c.h.b16 %v837
    %v1506 = vunpack.c.l.b16 %v838
    %v1507 = vunpack.c.h.b16 %v838
    %v1508 = vunpack.c.l.b16 %v839
    %v1509 = vunpack.c.h.b16 %v839
    %v1510 = vunpack.c.l.b16 %v840
    %v1511 = vunpack.c.h.b16 %v840
    %v1512 = vunpack.c.l.b16 %v841
    %v1513 = vunpack.c.h.b16 %v841
    %v1514 = vunpack.c.l.b16 %v842
    %v1515 = vunpack.c.h.b16 %v842
    %v1516 = vunpack.c.l.b16 %v843
    %v1517 = vunpack.c.h.b16 %v843
    %v1518 = vunpack.c.l.b16 %v844
    %v1519 = vunpack.c.h.b16 %v844
    %v1520 = vunpack.c.l.b16 %v845
    %v1521 = vunpack.c.h.b16 %v845
    %v1522 = vunpack.c.l.b16 %v846
    %v1523 = vunpack.c.h.b16 %v846
    %v1524 = vunpack.c.l.b16 %v847
    %v1525 = vunpack.c.h.b16 %v847
    %v1526 = vunpack.c.l.b16 %v848
    %v1527 = vunpack.c.h.b16 %v848
    %v1528 = vunpack.c.l.b16 %v849
    %v1529 = vunpack.c.h.b16 %v849
    %v1530 = vunpack.c.l.b16 %v850
    %v1531 = vunpack.c.h.b16 %v850
    %v1532 = vunpack.c.l.b16 %v851
    %v1533 = vunpack.c.h.b16 %v851
    %v1534 = vunpack.c.l.b16 %v852
    %v1535 = vunpack.c.h.b16 %v852
    %v1536 = vunpack.c.l.b16 %v853
    %v1537 = vunpack.c.h.b16 %v853
    %v1538 = vunpack.c.l.b16 %v854
    %v1539 = vunpack.c.h.b16 %v854
    %v1540 = vunpack.c.l.b16 %v855
    %v1541 = vunpack.c.h.b16 %v855
    %v1542 = vunpack.c.l.b16 %v856
    %v1543 = vunpack.c.h.b16 %v856
    %v1544 = vunpack.c.l.b16 %v857
    %v1545 = vunpack.c.h.b16 %v857
    %v1546 = vunpack.c.l.b16 %v858
    %v1547 = vunpack.c.h.b16 %v858
    %v1548 = vunpack.c.l.b16 %v859
    %v1549 = vunpack.c.h.b16 %v859
    %v1550 = vunpack.c.l.b16 %v860
    %v1551 = vunpack.c.h.b16 %v860
    %v1552 = vunpack.c.l.b16 %v861
    %v1553 = vunpack.c.h.b16 %v861
    %v1554 = vunpack.c.l.b16 %v862
    %v1555 = vunpack.c.h.b16 %v862
    %v1556 = vunpack.c.l.b16 %v863
    %v1557 = vunpack.c.h.b16 %v863
    %v1558 = vunpack.c.l.b16 %v864
    %v1559 = vunpack.c.h.b16 %v864
    %v1560 = vunpack.c.l.b16 %v865
    %v1561 = vunpack.c.h.b16 %v865
    %v1562 = vunpack.c.l.b16 %v866
    %v1563 = vunpack.c.h.b16 %v866
    %v1564 = vunpack.c.l.b16 %v867
    %v1565 = vunpack.c.h.b16 %v867
    %v1566 = vunpack.c.l.b16 %v868
    %v1567 = vunpack.c.h.b16 %v868
    %v1568 = vunpack.c.l.b16 %v869
    %v1569 = vunpack.c.h.b16 %v869
    %v1570 = vunpack.c.l.b16 %v870
    %v1571 = vunpack.c.h.b16 %v870
    %v1572 = vunpack.c.l.b16 %v871
    %v1573 = vunpack.c.h.b16 %v871
    %v1574 = vunpack.c.l.b16 %v872
    %v1575 = vunpack.c.h.b16 %v872
    %v1576 = vunpack.c.l.b16 %v873
    %v1577 = vunpack.c.h.b16 %v873
    %v1578 = vunpack.c.l.b16 %v874
    %v1579 = vunpack.c.h.b16 %v874
    %v1580 = vunpack.c.l.b16 %v875
    %v1581 = vunpack.c.h.b16 %v875
    %v1582 = vunpack.c.l.b16 %v876
    %v1583 = vunpack.c.h.b16 %v876
    %v1584 = vunpack.c.l.b16 %v877
    %v1585 = vunpack.c.h.b16 %v877
    %v1586 = vunpack.c.l.b16 %v878
    %v1587 = vunpack.c.h.b16 %v878
    %v1588 = vunpack.c.l.b16 %v879
    %v1589 = vunpack.c.h.b16 %v879
    %v1590 = vunpack.c.l.b16 %v880
    %v1591 = vunpack.c.h.b16 %v880
    %v1592 = vunpack.c.l.b16 %v881
    %v1593 = vunpack.c.h.b16 %v881
    %v1594 = vunpack.c.l.b16 %v882
    %v1595 = vunpack.c.h.b16 %v882
    %v1596 = vunpack.c.l.b16 %v883
    %v1597 = vunpack.c.h.b16 %v883
    %v1598 = vunpack.c.l.b16 %v884
    %v1599 = vunpack.c.h.b16 %v884
    %v1600 = vunpack.c.l.b16 %v885
    %v1601 = vunpack.c.h.b16 %v885
    %v1602 = vunpack.c.l.b16 %v886
    %v1603 = vunpack.c.h.b16 %v886
    %v1604 = vunpack.c.l.b16 %v887
    %v1605 = vunpack.c.h.b16 %v887
    %v1606 = vunpack.c.l.b16 %v888
    %v1607 = vunpack.c.h.b16 %v888
    %v1608 = vunpack.c.l.b16 %v889
    %v1609 = vunpack.c.h.b16 %v889
    %v1610 = vunpack.c.l.b16 %v890
    %v1611 = vunpack.c.h.b16 %v890
    %v1612 = vunpack.c.l.b16 %v891
    %v1613 = vunpack.c.h.b16 %v891
    %v1614 = vunpack.c.l.b16 %v892
    %v1615 = vunpack.c.h.b16 %v892
    %v1616 = vunpack.c.l.b16 %v893
    %v1617 = vunpack.c.h.b16 %v893
    %v1618 = vunpack.c.l.b16 %v894
    %v1619 = vunpack.c.h.b16 %v894
    %v1620 = vunpack.c.l.b16 %v895
    %v1621 = vunpack.c.h.b16 %v895
    %v1622 = vunpack.c.l.b16 %v896
    %v1623 = vunpack.c.h.b16 %v896
    %v1624 = vunpack.c.l.b16 %v897
    %v1625 = vunpack.c.h.b16 %v897
    %v1626 = vunpack.c.l.b16 %v898
    %v1627 = vunpack.c.h.b16 %v898
    %v1628 = vunpack.c.l.b16 %v899
    %v1629 = vunpack.c.h.b16 %v899
    %v1630 = vunpack.c.l.b16 %v900
    %v1631 = vunpack.c.h.b16 %v900
    %v1632 = vunpack.c.l.b16 %v901
    %v1633 = vunpack.c.h.b16 %v901
    %v1634 = vunpack.c.l.b16 %v902
    %v1635 = vunpack.c.h.b16 %v902
    %v1636 = vunpack.c.l.b16 %v903
    %v1637 = vunpack.c.h.b16 %v903
    %v1638 = vunpack.c.l.b16 %v904
    %v1639 = vunpack.c.h.b16 %v904
    %v1640 = vunpack.c.l.b16 %v905
    %v1641 = vunpack.c.h.b16 %v905
    %v1642 = vunpack.c.l.b16 %v906
    %v1643 = vunpack.c.h.b16 %v906
    %v1644 = vunpack.c.l.b16 %v907
    %v1645 = vunpack.c.h.b16 %v907
    %v1646 = vunpack.c.l.b16 %v908
    %v1647 = vunpack.c.h.b16 %v908
    %v1648 = vunpack.c.l.b16 %v909
    %v1649 = vunpack.c.h.b16 %v909
    %v1650 = vunpack.c.l.b16 %v910
    %v1651 = vunpack.c.h.b16 %v910
    %v1652 = vunpack.c.l.b16 %v911
    %v1653 = vunpack.c.h.b16 %v911
    %v1654 = vunpack.c.l.b16 %v912
    %v1655 = vunpack.c.h.b16 %v912
    %v1656 = vunpack.c.l.b16 %v913
    %v1657 = vunpack.c.h.b16 %v913
    %v1658 = vunpack.c.l.b16 %v914
    %v1659 = vunpack.c.h.b16 %v914
    %v1660 = vunpack.c.l.b16 %v915
    %v1661 = vunpack.c.h.b16 %v915
    %v1662 = vunpack.c.l.b16 %v916
    %v1663 = vunpack.c.h.b16 %v916
    %v1664 = vunpack.c.l.b16 %v917
    %v1665 = vunpack.c.h.b16 %v917
    %v1666 = vunpack.c.l.b16 %v918
    %v1667 = vunpack.c.h.b16 %v918
    %v1668 = vunpack.c.l.b16 %v919
    %v1669 = vunpack.c.h.b16 %v919
    %v1670 = vunpack.c.l.b16 %v920
    %v1671 = vunpack.c.h.b16 %v920
    %v1672 = vunpack.c.l.b16 %v921
    %v1673 = vunpack.c.h.b16 %v921
    %v1674 = vunpack.c.l.b16 %v922
    %v1675 = vunpack.c.h.b16 %v922
    %v1676 = vunpack.c.l.b16 %v923
    %v1677 = vunpack.c.h.b16 %v923
    %v1678 = vunpack.c.l.b16 %v924
    %v1679 = vunpack.c.h.b16 %v924
    %v1680 = vunpack.c.l.b16 %v925
    %v1681 = vunpack.c.h.b16 %v925
    %v1682 = vunpack.c.l.b16 %v926
    %v1683 = vunpack.c.h.b16 %v926
    %v1684 = vunpack.c.l.b16 %v927
    %v1685 = vunpack.c.h.b16 %v927
    %v1686 = vunpack.c.l.b16 %v928
    %v1687 = vunpack.c.h.b16 %v928
    %v1688 = vunpack.c.l.b16 %v929
    %v1689 = vunpack.c.h.b16 %v929
    %v1690 = vunpack.c.l.b16 %v930
    %v1691 = vunpack.c.h.b16 %v930
    %v1692 = vunpack.c.l.b16 %v931
    %v1693 = vunpack.c.h.b16 %v931
    %v1694 = vunpack.c.l.b16 %v932
    %v1695 = vunpack.c.h.b16 %v932
    %v1696 = vunpack.c.l.b16 %v933
    %v1697 = vunpack.c.h.b16 %v933
    %v1698 = vunpack.c.l.b16 %v934
    %v1699 = vunpack.c.h.b16 %v934
    %v1700 = vunpack.c.l.b16 %v935
    %v1701 = vunpack.c.h.b16 %v935
    %v1702 = vunpack.c.l.b16 %v936
    %v1703 = vunpack.c.h.b16 %v936
    %v1704 = vunpack.c.l.b16 %v937
    %v1705 = vunpack.c.h.b16 %v937
    %v1706 = vunpack.c.l.b16 %v938
    %v1707 = vunpack.c.h.b16 %v938
    %v1708 = vunpack.c.l.b16 %v939
    %v1709 = vunpack.c.h.b16 %v939
    %v1710 = vunpack.c.l.b16 %v940
    %v1711 = vunpack.c.h.b16 %v940
    %v1712 = vunpack.c.l.b16 %v941
    %v1713 = vunpack.c.h.b16 %v941
    %v1714 = vunpack.c.l.b16 %v942
    %v1715 = vunpack.c.h.b16 %v942
    %v1716 = vunpack.c.l.b16 %v943
    %v1717 = vunpack.c.h.b16 %v943
    %v1718 = vunpack.c.l.b16 %v944
    %v1719 = vunpack.c.h.b16 %v944
    %v1720 = vunpack.c.l.b16 %v945
    %v1721 = vunpack.c.h.b16 %v945
    %v1722 = vunpack.c.l.b16 %v946
    %v1723 = vunpack.c.h.b16 %v946
    %v1724 = vunpack.c.l.b16 %v947
    %v1725 = vunpack.c.h.b16 %v947
    %v1726 = vunpack.c.l.b16 %v948
    %v1727 = vunpack.c.h.b16 %v948
    %v1728 = vunpack.c.l.b16 %v949
    %v1729 = vunpack.c.h.b16 %v949
    %v1730 = vunpack.c.l.b16 %v950
    %v1731 = vunpack.c.h.b16 %v950
    %v1732 = vunpack.c.l.b16 %v951
    %v1733 = vunpack.c.h.b16 %v951
    %v1734 = vunpack.c.l.b16 %v952
    %v1735 = vunpack.c.h.b16 %v952
    %v1736 = vunpack.c.l.b16 %v953
    %v1737 = vunpack.c.h.b16 %v953
    %v1738 = vunpack.c.l.b16 %v954
    %v1739 = vunpack.c.h.b16 %v954
    %v1740 = vunpack.c.l.b16 %v955
    %v1741 = vunpack.c.h.b16 %v955
    %v1742 = vunpack.c.l.b16 %v956
    %v1743 = vunpack.c.h.b16 %v956
    %v1744 = vunpack.c.l.b16 %v957
    %v1745 = vunpack.c.h.b16 %v957
    %v1746 = vunpack.c.l.b16 %v958
    %v1747 = vunpack.c.h.b16 %v958
    %v1748 = vunpack.c.l.b16 %v959
    %v1749 = vunpack.c.h.b16 %v959
    %v1750 = vunpack.c.l.b16 %v960
    %v1751 = vunpack.c.h.b16 %v960
    %v1752 = vunpack.c.l.b16 %v961
    %v1753 = vunpack.c.h.b16 %v961
    %v1754 = vunpack.c.l.b16 %v962
    %v1755 = vunpack.c.h.b16 %v962
    %v1756 = vunpack.c.l.b16 %v963
    %v1757 = vunpack.c.h.b16 %v963
    %v1758 = vunpack.c.l.b16 %v964
    %v1759 = vunpack.c.h.b16 %v964
    %v1760 = vunpack.c.l.b16 %v965
    %v1761 = vunpack.c.h.b16 %v965
    %v1762 = vunpack.c.l.b16 %v966
    %v1763 = vunpack.c.h.b16 %v966
    %v1764 = vunpack.c.l.b16 %v967
    %v1765 = vunpack.c.h.b16 %v967
    %v1766 = vunpack.c.l.b16 %v968
    %v1767 = vunpack.c.h.b16 %v968
    %v1768 = vunpack.c.l.b16 %v969
    %v1769 = vunpack.c.h.b16 %v969
    %v1770 = vunpack.c.l.b16 %v970
    %v1771 = vunpack.c.h.b16 %v970
    %v1772 = vunpack.c.l.b16 %v971
    %v1773 = vunpack.c.h.b16 %v971
    %v1774 = vunpack.c.l.b16 %v972
    %v1775 = vunpack.c.h.b16 %v972
    %v1776 = vunpack.c.l.b16 %v973
    %v1777 = vunpack.c.h.b16 %v973
    %v1778 = vunpack.c.l.b16 %v974
    %v1779 = vunpack.c.h.b16 %v974
    %v1780 = vunpack.c.l.b16 %v975
    %v1781 = vunpack.c.h.b16 %v975
    %v1782 = vunpack.c.l.b16 %v976
    %v1783 = vunpack.c.h.b16 %v976
    %v1784 = vunpack.c.l.b16 %v977
    %v1785 = vunpack.c.h.b16 %v977
    %v1786 = vunpack.c.l.b16 %v978
    %v1787 = vunpack.c.h.b16 %v978
    %v1788 = vunpack.c.l.b16 %v979
    %v1789 = vunpack.c.h.b16 %v979
    %v1790 = vpack.c.b16 %v1286, %v1278
    %v1791 = vpack.c.b16 %v1287, %v1279
    %v1792 = vpack.c.b16 %v1288, %v1280
    %v1793 = vpack.c.b16 %v1289, %v1281
    %v1794 = vpack.c.b16 %v1290, %v1282
    %v1795 = vpack.c.b16 %v1291, %v1283
    %v1796 = vpack.c.b16 %v1292, %v1284
    %v1797 = vpack.c.b16 %v1293, %v1285
    %v1798 = vpack.c.b16 %v1302, %v1294
    %v1799 = vpack.c.b16 %v1303, %v1295
    %v1800 = vpack.c.b16 %v1304, %v1296
    %v1801 = vpack.c.b16 %v1305, %v1297
    %v1802 = vpack.c.b16 %v1306, %v1298
    %v1803 = vpack.c.b16 %v1307, %v1299
    %v1804 = vpack.c.b16 %v1308, %v1300
    %v1805 = vpack.c.b16 %v1309, %v1301
    %v1806 = vpack.c.b16 %v1318, %v1310
    %v1807 = vpack.c.b16 %v1319, %v1311
    %v1808 = vpack.c.b16 %v1320, %v1312
    %v1809 = vpack.c.b16 %v1321, %v1313
    %v1810 = vpack.c.b16 %v1322, %v1314
    %v1811 = vpack.c.b16 %v1323, %v1315
    %v1812 = vpack.c.b16 %v1324, %v1316
    %v1813 = vpack.c.b16 %v1325, %v1317
    %v1814 = vpack.c.b16 %v1334, %v1326
    %v1815 = vpack.c.b16 %v1335, %v1327
    %v1816 = vpack.c.b16 %v1336, %v1328
    %v1817 = vpack.c.b16 %v1337, %v1329
    %v1818 = vpack.c.b16 %v1338, %v1330
    %v1819 = vpack.c.b16 %v1339, %v1331
    %v1820 = vpack.c.b16 %v1340, %v1332
    %v1821 = vpack.c.b16 %v1341, %v1333
    %v1822 = vpack.c.b16 %v1350, %v1342
    %v1823 = vpack.c.b16 %v1351, %v1343
    %v1824 = vpack.c.b16 %v1352, %v1344
    %v1825 = vpack.c.b16 %v1353, %v1345
    %v1826 = vpack.c.b16 %v1354, %v1346
    %v1827 = vpack.c.b16 %v1355, %v1347
    %v1828 = vpack.c.b16 %v1356, %v1348
    %v1829 = vpack.c.b16 %v1357, %v1349
    %v1830 = vpack.c.b16 %v1366, %v1358
    %v1831 = vpack.c.b16 %v1367, %v1359
    %v1832 = vpack.c.b16 %v1368, %v1360
    %v1833 = vpack.c.b16 %v1369, %v1361
    %v1834 = vpack.c.b16 %v1370, %v1362
    %v1835 = vpack.c.b16 %v1371, %v1363
    %v1836 = vpack.c.b16 %v1372, %v1364
    %v1837 = vpack.c.b16 %v1373, %v1365
    %v1838 = vpack.c.b16 %v1382, %v1374
    %v1839 = vpack.c.b16 %v1383, %v1375
    %v1840 = vpack.c.b16 %v1384, %v1376
    %v1841 = vpack.c.b16 %v1385, %v1377
    %v1842 = vpack.c.b16 %v1386, %v1378
    %v1843 = vpack.c.b16 %v1387, %v1379
    %v1844 = vpack.c.b16 %v1388, %v1380
    %v1845 = vpack.c.b16 %v1389, %v1381
    %v1846 = vpack.c.b16 %v1398, %v1390
    %v1847 = vpack.c.b16 %v1399, %v1391
    %v1848 = vpack.c.b16 %v1400, %v1392
    %v1849 = vpack.c.b16 %v1401, %v1393
    %v1850 = vpack.c.b16 %v1402, %v1394
    %v1851 = vpack.c.b16 %v1403, %v1395
    %v1852 = vpack.c.b16 %v1404, %v1396
    %v1853 = vpack.c.b16 %v1405, %v1397
    %v1854 = vpack.c.b16 %v1414, %v1406
    %v1855 = vpack.c.b16 %v1415, %v1407
    %v1856 = vpack.c.b16 %v1416, %v1408
    %v1857 = vpack.c.b16 %v1417, %v1409
    %v1858 = vpack.c.b16 %v1418, %v1410
    %v1859 = vpack.c.b16 %v1419, %v1411
    %v1860 = vpack.c.b16 %v1420, %v1412
    %v1861 = vpack.c.b16 %v1421, %v1413
    %v1862 = vpack.c.b16 %v1430, %v1422
    %v1863 = vpack.c.b16 %v1431, %v1423
    %v1864 = vpack.c.b16 %v1432, %v1424
    %v1865 = vpack.c.b16 %v1433, %v1425
    %v1866 = vpack.c.b16 %v1434, %v1426
    %v1867 = vpack.c.b16 %v1435, %v1427
    %v1868 = vpack.c.b16 %v1436, %v1428
    %v1869 = vpack.c.b16 %v1437, %v1429
    %v1870 = vpack.c.b16 %v1446, %v1438
    %v1871 = vpack.c.b16 %v1447, %v1439
    %v1872 = vpack.c.b16 %v1448, %v1440
    %v1873 = vpack.c.b16 %v1449, %v1441
    %v1874 = vpack.c.b16 %v1450, %v1442
    %v1875 = vpack.c.b16 %v1451, %v1443
    %v1876 = vpack.c.b16 %v1452, %v1444
    %v1877 = vpack.c.b16 %v1453, %v1445
    %v1878 = vpack.c.b16 %v1462, %v1454
    %v1879 = vpack.c.b16 %v1463, %v1455
    %v1880 = vpack.c.b16 %v1464, %v1456
    %v1881 = vpack.c.b16 %v1465, %v1457
    %v1882 = vpack.c.b16 %v1466, %v1458
    %v1883 = vpack.c.b16 %v1467, %v1459
    %v1884 = vpack.c.b16 %v1468, %v1460
    %v1885 = vpack.c.b16 %v1469, %v1461
    %v1886 = vpack.c.b16 %v1478, %v1470
    %v1887 = vpack.c.b16 %v1479, %v1471
    %v1888 = vpack.c.b16 %v1480, %v1472
    %v1889 = vpack.c.b16 %v1481, %v1473
    %v1890 = vpack.c.b16 %v1482, %v1474
    %v1891 = vpack.c.b16 %v1483, %v1475
    %v1892 = vpack.c.b16 %v1484, %v1476
    %v1893 = vpack.c.b16 %v1485, %v1477
    %v1894 = vpack.c.b16 %v1494, %v1486
    %v1895 = vpack.c.b16 %v1495, %v1487
    %v1896 = vpack.c.b16 %v1496, %v1488
    %v1897 = vpack.c.b16 %v1497, %v1489
    %v1898 = vpack.c.b16 %v1498, %v1490
    %v1899 = vpack.c.b16 %v1499, %v1491
    %v1900 = vpack.c.b16 %v1500, %v1492
    %v1901 = vpack.c.b16 %v1501, %v1493
    %v1902 = vpack.c.b16 %v1510, %v1502
    %v1903 = vpack.c.b16 %v1511, %v1503
    %v1904 = vpack.c.b16 %v1512, %v1504
    %v1905 = vpack.c.b16 %v1513, %v1505
    %v1906 = vpack.c.b16 %v1514, %v1506
    %v1907 = vpack.c.b16 %v1515, %v1507
    %v1908 = vpack.c.b16 %v1516, %v1508
    %v1909 = vpack.c.b16 %v1517, %v1509
    %v1910 = vpack.c.b16 %v1526, %v1518
    %v1911 = vpack.c.b16 %v1527, %v1519
    %v1912 = vpack.c.b16 %v1528, %v1520
    %v1913 = vpack.c.b16 %v1529, %v1521
    %v1914 = vpack.c.b16 %v1530, %v1522
    %v1915 = vpack.c.b16 %v1531, %v1523
    %v1916 = vpack.c.b16 %v1532, %v1524
    %v1917 = vpack.c.b16 %v1533, %v1525
    %v1918 = vpack.c.b16 %v1542, %v1534
    %v1919 = vpack.c.b16 %v1543, %v1535
    %v1920 = vpack.c.b16 %v1544, %v1536
    %v1921 = vpack.c.b16 %v1545, %v1537
    %v1922 = vpack.c.b16 %v1546, %v1538
    %v1923 = vpack.c.b16 %v1547, %v1539
    %v1924 = vpack.c.b16 %v1548, %v1540
    %v1925 = vpack.c.b16 %v1549, %v1541
    %v1926 = vpack.c.b16 %v1558, %v1550
    %v1927 = vpack.c.b16 %v1559, %v1551
    %v1928 = vpack.c.b16 %v1560, %v1552
    %v1929 = vpack.c.b16 %v1561, %v1553
    %v1930 = vpack.c.b16 %v1562, %v1554
    %v1931 = vpack.c.b16 %v1563, %v1555
    %v1932 = vpack.c.b16 %v1564, %v1556
    %v1933 = vpack.c.b16 %v1565, %v1557
    %v1934 = vpack.c.b16 %v1574, %v1566
    %v1935 = vpack.c.b16 %v1575, %v1567
    %v1936 = vpack.c.b16 %v1576, %v1568
    %v1937 = vpack.c.b16 %v1577, %v1569
    %v1938 = vpack.c.b16 %v1578, %v1570
    %v1939 = vpack.c.b16 %v1579, %v1571
    %v1940 = vpack.c.b16 %v1580, %v1572
    %v1941 = vpack.c.b16 %v1581, %v1573
    %v1942 = vpack.c.b16 %v1590, %v1582
    %v1943 = vpack.c.b16 %v1591, %v1583
    %v1944 = vpack.c.b16 %v1592, %v1584
    %v1945 = vpack.c.b16 %v1593, %v1585
    %v1946 = vpack.c.b16 %v1594, %v1586
    %v1947 = vpack.c.b16 %v1595, %v1587
    %v1948 = vpack.c.b16 %v1596, %v1588
    %v1949 = vpack.c.b16 %v1597, %v1589
    %v1950 = vpack.c.b16 %v1606, %v1598
    %v1951 = vpack.c.b16 %v1607, %v1599
    %v1952 = vpack.c.b16 %v1608, %v1600
    %v1953 = vpack.c.b16 %v1609, %v1601
    %v1954 = vpack.c.b16 %v1610, %v1602
    %v1955 = vpack.c.b16 %v1611, %v1603
    %v1956 = vpack.c.b16 %v1612, %v1604
    %v1957 = vpack.c.b16 %v1613, %v1605
    %v1958 = vpack.c.b16 %v1622, %v1614
    %v1959 = vpack.c.b16 %v1623, %v1615
    %v1960 = vpack.c.b16 %v1624, %v1616
    %v1961 = vpack.c.b16 %v1625, %v1617
    %v1962 = vpack.c.b16 %v1626, %v1618
    %v1963 = vpack.c.b16 %v1627, %v1619
    %v1964 = vpack.c.b16 %v1628, %v1620
    %v1965 = vpack.c.b16 %v1629, %v1621
    %v1966 = vpack.c.b16 %v1638, %v1630
    %v1967 = vpack.c.b16 %v1639, %v1631
    %v1968 = vpack.c.b16 %v1640, %v1632
    %v1969 = vpack.c.b16 %v1641, %v1633
    %v1970 = vpack.c.b16 %v1642, %v1634
    %v1971 = vpack.c.b16 %v1643, %v1635
    %v1972 = vpack.c.b16 %v1644, %v1636
    %v1973 = vpack.c.b16 %v1645, %v1637
    %v1974 = vpack.c.b16 %v1654, %v1646
    %v1975 = vpack.c.b16 %v1655, %v1647
    %v1976 = vpack.c.b16 %v1656, %v1648
    %v1977 = vpack.c.b16 %v1657, %v1649
    %v1978 = vpack.c.b16 %v1658, %v1650
    %v1979 = vpack.c.b16 %v1659, %v1651
    %v1980 = vpack.c.b16 %v1660, %v1652
    %v1981 = vpack.c.b16 %v1661, %v1653
    %v1982 = vpack.c.b16 %v1670, %v1662
    %v1983 = vpack.c.b16 %v1671, %v1663
    %v1984 = vpack.c.b16 %v1672, %v1664
    %v1985 = vpack.c.b16 %v1673, %v1665
    %v1986 = vpack.c.b16 %v1674, %v1666
    %v1987 = vpack.c.b16 %v1675, %v1667
    %v1988 = vpack.c.b16 %v1676, %v1668
    %v1989 = vpack.c.b16 %v1677, %v1669
    %v1990 = vpack.c.b16 %v1686, %v1678
    %v1991 = vpack.c.b16 %v1687, %v1679
    %v1992 = vpack.c.b16 %v1688, %v1680
    %v1993 = vpack.c.b16 %v1689, %v1681
    %v1994 = vpack.c.b16 %v1690, %v1682
    %v1995 = vpack.c.b16 %v1691, %v1683
    %v1996 = vpack.c.b16 %v1692, %v1684
    %v1997 = vpack.c.b16 %v1693, %v1685
    %v1998 = vpack.c.b16 %v1702, %v1694
    %v1999 = vpack.c.b16 %v1703, %v1695
    %v2000 = vpack.c.b16 %v1704, %v1696
    %v2001 = vpack.c.b16 %v1705, %v1697
    %v2002 = vpack.c.b16 %v1706, %v1698
    %v2003 = vpack.c.b16 %v1707, %v1699
    %v2004 = vpack.c.b16 %v1708, %v1700
    %v2005 = vpack.c.b16 %v1709, %v1701
    %v2006 = vpack.c.b16 %v1718, %v1710
    %v2007 = vpack.c.b16 %v1719, %v1711
    %v2008 = vpack.c.b16 %v1720, %v1712
    %v2009 = vpack.c.b16 %v1721, %v1713
    %v2010 = vpack.c.b16 %v1722, %v1714
    %v2011 = vpack.c.b16 %v1723, %v1715
    %v2012 = vpack.c.b16 %v1724, %v1716
    %v2013 = vpack.c.b16 %v1725, %v1717
    %v2014 = vpack.c.b16 %v1734, %v1726
    %v2015 = vpack.c.b16 %v1735, %v1727
    %v2016 = vpack.c.b16 %v1736, %v1728
    %v2017 = vpack.c.b16 %v1737, %v1729
    %v2018 = vpack.c.b16 %v1738, %v1730
    %v2019 = vpack.c.b16 %v1739, %v1731
    %v2020 = vpack.c.b16 %v1740, %v1732
    %v2021 = vpack.c.b16 %v1741, %v1733
    %v2022 = vpack.c.b16 %v1750, %v1742
    %v2023 = vpack.c.b16 %v1751, %v1743
    %v2024 = vpack.c.b16 %v1752, %v1744
    %v2025 = vpack.c.b16 %v1753, %v1745
    %v2026 = vpack.c.b16 %v1754, %v1746
    %v2027 = vpack.c.b16 %v1755, %v1747
    %v2028 = vpack.c.b16 %v1756, %v1748
    %v2029 = vpack.c.b16 %v1757, %v1749
    %v2030 = vpack.c.b16 %v1766, %v1758
    %v2031 = vpack.c.b16 %v1767, %v1759
    %v2032 = vpack.c.b16 %v1768, %v1760
    %v2033 = vpack.c.b16 %v1769, %v1761
    %v2034 = vpack.c.b16 %v1770, %v1762
    %v2035 = vpack.c.b16 %v1771, %v1763
    %v2036 = vpack.c.b16 %v1772, %v1764
    %v2037 = vpack.c.b16 %v1773, %v1765
    %v2038 = vpack.c.b16 %v1782, %v1774
    %v2039 = vpack.c.b16 %v1783, %v1775
    %v2040 = vpack.c.b16 %v1784, %v1776
    %v2041 = vpack.c.b16 %v1785, %v1777
    %v2042 = vpack.c.b16 %v1786, %v1778
    %v2043 = vpack.c.b16 %v1787, %v1779
    %v2044 = vpack.c.b16 %v1788, %v1780
    %v2045 = vpack.c.b16 %v1789, %v1781
    %2302 = vmatprep.subr.bf16.mxu0 %v1791
    %2303 = vmatpush1.bf16.msra.mxu0 %v1790
    %2304 = vmatprep.subr.bf16.mxu0 %v1799
    %2305 = vmatpush1.bf16.msra.mxu0 %v1798
    %2306 = vmatprep.subr.bf16.mxu0 %v1807
    %2307 = vmatpush1.bf16.msra.mxu0 %v1806
    %2308 = vmatprep.subr.bf16.mxu0 %v1815
    %2309 = vmatpush1.bf16.msra.mxu0 %v1814
    %2310 = vmatprep.subr.bf16.mxu0 %v1823
    %2311 = vmatpush1.bf16.msra.mxu0 %v1822
    %2312 = vmatprep.subr.bf16.mxu0 %v1831
    %2313 = vmatpush1.bf16.msra.mxu0 %v1830
    %2314 = vmatprep.subr.bf16.mxu0 %v1839
    %2315 = vmatpush1.bf16.msra.mxu0 %v1838
    %2316 = vmatprep.subr.bf16.mxu0 %v1847
    %2317 = vmatpush1.bf16.msra.mxu0 %v1846
    %2318 = vmatprep.subr.bf16.mxu0 %v1855
    %2319 = vmatpush1.bf16.msra.mxu0 %v1854
    %2320 = vmatprep.subr.bf16.mxu0 %v1863
    %2321 = vmatpush1.bf16.msra.mxu0 %v1862
    %2322 = vmatprep.subr.bf16.mxu0 %v1871
    %2323 = vmatpush1.bf16.msra.mxu0 %v1870
    %2324 = vmatprep.subr.bf16.mxu0 %v1879
    %2325 = vmatpush1.bf16.msra.mxu0 %v1878
    %2326 = vmatprep.subr.bf16.mxu0 %v1887
    %2327 = vmatpush1.bf16.msra.mxu0 %v1886
    %2328 = vmatprep.subr.bf16.mxu0 %v1895
    %2329 = vmatpush1.bf16.msra.mxu0 %v1894
    %2330 = vmatprep.subr.bf16.mxu0 %v1903
    %2331 = vmatpush1.bf16.msra.mxu0 %v1902
    %2332 = vmatprep.subr.bf16.mxu0 %v1911
    %2333 = vmatpush1.bf16.msra.mxu0 %v1910
    %2334 = vmatprep.mubr.bf16.mxu0 %v721
    %2335 = vmatmul.mubr.bf16.gmra.mrb[0].mxu0 %v720
    %v2336 = vpop.f32.mrb[0].mxu0
    %v2337 = vadd.f32 %v985, %v2336
    %v2338 = vpop.f32.mrb[0].mxu0
    %v2339 = vadd.f32 %v989, %v2338
    %v2340 = vpop.f32.mrb[0].mxu0
    %v2341 = vpop.f32.mrb[0].mxu0
    %2342 = vdwg.mxu0
    %2343 = vmatprep.subr.bf16.mxu0 %v1919
    %2344 = vmatpush1.bf16.msra.mxu0 %v1918
    %2345 = vmatprep.subr.bf16.mxu0 %v1927
    %2346 = vmatpush1.bf16.msra.mxu0 %v1926
    %2347 = vmatprep.subr.bf16.mxu0 %v1935
    %2348 = vmatpush1.bf16.msra.mxu0 %v1934
    %2349 = vmatprep.subr.bf16.mxu0 %v1943
    %2350 = vmatpush1.bf16.msra.mxu0 %v1942
    %2351 = vmatprep.subr.bf16.mxu0 %v1951
    %2352 = vmatpush1.bf16.msra.mxu0 %v1950
    %2353 = vmatprep.subr.bf16.mxu0 %v1959
    %2354 = vmatpush1.bf16.msra.mxu0 %v1958
    %2355 = vmatprep.subr.bf16.mxu0 %v1967
    %2356 = vmatpush1.bf16.msra.mxu0 %v1966
    %2357 = vmatprep.subr.bf16.mxu0 %v1975
    %2358 = vmatpush1.bf16.msra.mxu0 %v1974
    %2359 = vmatprep.subr.bf16.mxu0 %v1983
    %2360 = vmatpush1.bf16.msra.mxu0 %v1982
    %2361 = vmatprep.subr.bf16.mxu0 %v1991
    %2362 = vmatpush1.bf16.msra.mxu0 %v1990
    %2363 = vmatprep.subr.bf16.mxu0 %v1999
    %2364 = vmatpush1.bf16.msra.mxu0 %v1998
    %2365 = vmatprep.subr.bf16.mxu0 %v2007
    %2366 = vmatpush1.bf16.msra.mxu0 %v2006
    %2367 = vmatprep.subr.bf16.mxu0 %v2015
    %2368 = vmatpush1.bf16.msra.mxu0 %v2014
    %2369 = vmatprep.subr.bf16.mxu0 %v2023
    %2370 = vmatpush1.bf16.msra.mxu0 %v2022
    %2371 = vmatprep.subr.bf16.mxu0 %v2031
    %2372 = vmatpush1.bf16.msra.mxu0 %v2030
    %2373 = vmatprep.subr.bf16.mxu0 %v2039
    %2374 = vmatpush1.bf16.msra.mxu0 %v2038
    %2375 = vmatprep.mubr.bf16.mxu0 %v723
    %2376 = vmatmul.mubr.bf16.gmra.mrb[0].mxu0 %v722
    %v2377 = vpop.f32.mrb[0].mxu0
    %v2378 = vadd.f32 %v2337, %v2377
    %v2379 = vpop.f32.mrb[0].mxu0
    %v2380 = vadd.f32 %v2339, %v2379
    %v2381 = vpop.f32.mrb[0].mxu0
    %v2382 = vpop.f32.mrb[0].mxu0
    %2383 = vdwg.mxu0
    %2384 = vmatprep.subr.bf16.mxu0 %v1793
    %2385 = vmatpush1.bf16.msra.mxu0 %v1792
    %2386 = vmatprep.subr.bf16.mxu0 %v1801
    %2387 = vmatpush1.bf16.msra.mxu0 %v1800
    %2388 = vmatprep.subr.bf16.mxu0 %v1809
    %2389 = vmatpush1.bf16.msra.mxu0 %v1808
    %2390 = vmatprep.subr.bf16.mxu0 %v1817
    %2391 = vmatpush1.bf16.msra.mxu0 %v1816
    %2392 = vmatprep.subr.bf16.mxu0 %v1825
    %2393 = vmatpush1.bf16.msra.mxu0 %v1824
    %2394 = vmatprep.subr.bf16.mxu0 %v1833
    %2395 = vmatpush1.bf16.msra.mxu0 %v1832
    %2396 = vmatprep.subr.bf16.mxu0 %v1841
    %2397 = vmatpush1.bf16.msra.mxu0 %v1840
    %2398 = vmatprep.subr.bf16.mxu0 %v1849
    %2399 = vmatpush1.bf16.msra.mxu0 %v1848
    %2400 = vmatprep.subr.bf16.mxu0 %v1857
    %2401 = vmatpush1.bf16.msra.mxu0 %v1856
    %2402 = vmatprep.subr.bf16.mxu0 %v1865
    %2403 = vmatpush1.bf16.msra.mxu0 %v1864
    %2404 = vmatprep.subr.bf16.mxu0 %v1873
    %2405 = vmatpush1.bf16.msra.mxu0 %v1872
    %2406 = vmatprep.subr.bf16.mxu0 %v1881
    %2407 = vmatpush1.bf16.msra.mxu0 %v1880
    %2408 = vmatprep.subr.bf16.mxu0 %v1889
    %2409 = vmatpush1.bf16.msra.mxu0 %v1888
    %2410 = vmatprep.subr.bf16.mxu0 %v1897
    %2411 = vmatpush1.bf16.msra.mxu0 %v1896
    %2412 = vmatprep.subr.bf16.mxu0 %v1905
    %2413 = vmatpush1.bf16.msra.mxu0 %v1904
    %2414 = vmatprep.subr.bf16.mxu0 %v1913
    %2415 = vmatpush1.bf16.msra.mxu0 %v1912
    %2416 = vmatprep.mubr.bf16.mxu0 %v721
    %2417 = vmatmul.mubr.bf16.gmra.mrb[0].mxu0 %v720
    %v2418 = vpop.f32.mrb[0].mxu0
    %v2419 = vadd.f32 %v993, %v2418
    %v2420 = vpop.f32.mrb[0].mxu0
    %v2421 = vadd.f32 %v997, %v2420
    %v2422 = vpop.f32.mrb[0].mxu0
    %v2423 = vpop.f32.mrb[0].mxu0
    %2424 = vdwg.mxu0
    %2425 = vmatprep.subr.bf16.mxu0 %v1921
    %2426 = vmatpush1.bf16.msra.mxu0 %v1920
    %2427 = vmatprep.subr.bf16.mxu0 %v1929
    %2428 = vmatpush1.bf16.msra.mxu0 %v1928
    %2429 = vmatprep.subr.bf16.mxu0 %v1937
    %2430 = vmatpush1.bf16.msra.mxu0 %v1936
    %2431 = vmatprep.subr.bf16.mxu0 %v1945
    %2432 = vmatpush1.bf16.msra.mxu0 %v1944
    %2433 = vmatprep.subr.bf16.mxu0 %v1953
    %2434 = vmatpush1.bf16.msra.mxu0 %v1952
    %2435 = vmatprep.subr.bf16.mxu0 %v1961
    %2436 = vmatpush1.bf16.msra.mxu0 %v1960
    %2437 = vmatprep.subr.bf16.mxu0 %v1969
    %2438 = vmatpush1.bf16.msra.mxu0 %v1968
    %2439 = vmatprep.subr.bf16.mxu0 %v1977
    %2440 = vmatpush1.bf16.msra.mxu0 %v1976
    %2441 = vmatprep.subr.bf16.mxu0 %v1985
    %2442 = vmatpush1.bf16.msra.mxu0 %v1984
    %2443 = vmatprep.subr.bf16.mxu0 %v1993
    %2444 = vmatpush1.bf16.msra.mxu0 %v1992
    %2445 = vmatprep.subr.bf16.mxu0 %v2001
    %2446 = vmatpush1.bf16.msra.mxu0 %v2000
    %2447 = vmatprep.subr.bf16.mxu0 %v2009
    %2448 = vmatpush1.bf16.msra.mxu0 %v2008
    %2449 = vmatprep.subr.bf16.mxu0 %v2017
    %2450 = vmatpush1.bf16.msra.mxu0 %v2016
    %2451 = vmatprep.subr.bf16.mxu0 %v2025
    %2452 = vmatpush1.bf16.msra.mxu0 %v2024
    %2453 = vmatprep.subr.bf16.mxu0 %v2033
    %2454 = vmatpush1.bf16.msra.mxu0 %v2032
    %2455 = vmatprep.subr.bf16.mxu0 %v2041
    %2456 = vmatpush1.bf16.msra.mxu0 %v2040
    %2457 = vmatprep.mubr.bf16.mxu0 %v723
    %2458 = vmatmul.mubr.bf16.gmra.mrb[0].mxu0 %v722
    %v2459 = vpop.f32.mrb[0].mxu0
    %v2460 = vadd.f32 %v2419, %v2459
    %v2461 = vpop.f32.mrb[0].mxu0
    %v2462 = vadd.f32 %v2421, %v2461
    %v2463 = vpop.f32.mrb[0].mxu0
    %v2464 = vpop.f32.mrb[0].mxu0
    %2465 = vdwg.mxu0
    %2466 = vmatprep.subr.bf16.mxu0 %v1795
    %2467 = vmatpush1.bf16.msra.mxu0 %v1794
    %2468 = vmatprep.subr.bf16.mxu0 %v1803
    %2469 = vmatpush1.bf16.msra.mxu0 %v1802
    %2470 = vmatprep.subr.bf16.mxu0 %v1811
    %2471 = vmatpush1.bf16.msra.mxu0 %v1810
    %2472 = vmatprep.subr.bf16.mxu0 %v1819
    %2473 = vmatpush1.bf16.msra.mxu0 %v1818
    %2474 = vmatprep.subr.bf16.mxu0 %v1827
    %2475 = vmatpush1.bf16.msra.mxu0 %v1826
    %2476 = vmatprep.subr.bf16.mxu0 %v1835
    %2477 = vmatpush1.bf16.msra.mxu0 %v1834
    %2478 = vmatprep.subr.bf16.mxu0 %v1843
    %2479 = vmatpush1.bf16.msra.mxu0 %v1842
    %2480 = vmatprep.subr.bf16.mxu0 %v1851
    %2481 = vmatpush1.bf16.msra.mxu0 %v1850
    %2482 = vmatprep.subr.bf16.mxu0 %v1859
    %2483 = vmatpush1.bf16.msra.mxu0 %v1858
    %2484 = vmatprep.subr.bf16.mxu0 %v1867
    %2485 = vmatpush1.bf16.msra.mxu0 %v1866
    %2486 = vmatprep.subr.bf16.mxu0 %v1875
    %2487 = vmatpush1.bf16.msra.mxu0 %v1874
    %2488 = vmatprep.subr.bf16.mxu0 %v1883
    %2489 = vmatpush1.bf16.msra.mxu0 %v1882
    %2490 = vmatprep.subr.bf16.mxu0 %v1891
    %2491 = vmatpush1.bf16.msra.mxu0 %v1890
    %2492 = vmatprep.subr.bf16.mxu0 %v1899
    %2493 = vmatpush1.bf16.msra.mxu0 %v1898
    %2494 = vmatprep.subr.bf16.mxu0 %v1907
    %2495 = vmatpush1.bf16.msra.mxu0 %v1906
    %2496 = vmatprep.subr.bf16.mxu0 %v1915
    %2497 = vmatpush1.bf16.msra.mxu0 %v1914
    %2498 = vmatprep.mubr.bf16.mxu0 %v721
    %2499 = vmatmul.mubr.bf16.gmra.mrb[0].mxu0 %v720
    %v2500 = vpop.f32.mrb[0].mxu0
    %v2501 = vadd.f32 %v1001, %v2500
    %v2502 = vpop.f32.mrb[0].mxu0
    %v2503 = vadd.f32 %v1005, %v2502
    %v2504 = vpop.f32.mrb[0].mxu0
    %v2505 = vpop.f32.mrb[0].mxu0
    %2506 = vdwg.mxu0
    %2507 = vmatprep.subr.bf16.mxu0 %v1923
    %2508 = vmatpush1.bf16.msra.mxu0 %v1922
    %2509 = vmatprep.subr.bf16.mxu0 %v1931
    %2510 = vmatpush1.bf16.msra.mxu0 %v1930
    %2511 = vmatprep.subr.bf16.mxu0 %v1939
    %2512 = vmatpush1.bf16.msra.mxu0 %v1938
    %2513 = vmatprep.subr.bf16.mxu0 %v1947
    %2514 = vmatpush1.bf16.msra.mxu0 %v1946
    %2515 = vmatprep.subr.bf16.mxu0 %v1955
    %2516 = vmatpush1.bf16.msra.mxu0 %v1954
    %2517 = vmatprep.subr.bf16.mxu0 %v1963
    %2518 = vmatpush1.bf16.msra.mxu0 %v1962
    %2519 = vmatprep.subr.bf16.mxu0 %v1971
    %2520 = vmatpush1.bf16.msra.mxu0 %v1970
    %2521 = vmatprep.subr.bf16.mxu0 %v1979
    %2522 = vmatpush1.bf16.msra.mxu0 %v1978
    %2523 = vmatprep.subr.bf16.mxu0 %v1987
    %2524 = vmatpush1.bf16.msra.mxu0 %v1986
    %2525 = vmatprep.subr.bf16.mxu0 %v1995
    %2526 = vmatpush1.bf16.msra.mxu0 %v1994
    %2527 = vmatprep.subr.bf16.mxu0 %v2003
    %2528 = vmatpush1.bf16.msra.mxu0 %v2002
    %2529 = vmatprep.subr.bf16.mxu0 %v2011
    %2530 = vmatpush1.bf16.msra.mxu0 %v2010
    %2531 = vmatprep.subr.bf16.mxu0 %v2019
    %2532 = vmatpush1.bf16.msra.mxu0 %v2018
    %2533 = vmatprep.subr.bf16.mxu0 %v2027
    %2534 = vmatpush1.bf16.msra.mxu0 %v2026
    %2535 = vmatprep.subr.bf16.mxu0 %v2035
    %2536 = vmatpush1.bf16.msra.mxu0 %v2034
    %2537 = vmatprep.subr.bf16.mxu0 %v2043
    %2538 = vmatpush1.bf16.msra.mxu0 %v2042
    %2539 = vmatprep.mubr.bf16.mxu0 %v723
    %2540 = vmatmul.mubr.bf16.gmra.mrb[0].mxu0 %v722
    %v2541 = vpop.f32.mrb[0].mxu0
    %v2542 = vadd.f32 %v2501, %v2541
    %v2543 = vpop.f32.mrb[0].mxu0
    %v2544 = vadd.f32 %v2503, %v2543
    %v2545 = vpop.f32.mrb[0].mxu0
    %v2546 = vpop.f32.mrb[0].mxu0
    %2547 = vdwg.mxu0
    %2548 = vmatprep.subr.bf16.mxu0 %v1797
    %2549 = vmatpush1.bf16.msra.mxu0 %v1796
    %2550 = vmatprep.subr.bf16.mxu0 %v1805
    %2551 = vmatpush1.bf16.msra.mxu0 %v1804
    %2552 = vmatprep.subr.bf16.mxu0 %v1813
    %2553 = vmatpush1.bf16.msra.mxu0 %v1812
    %2554 = vmatprep.subr.bf16.mxu0 %v1821
    %2555 = vmatpush1.bf16.msra.mxu0 %v1820
    %2556 = vmatprep.subr.bf16.mxu0 %v1829
    %2557 = vmatpush1.bf16.msra.mxu0 %v1828
    %2558 = vmatprep.subr.bf16.mxu0 %v1837
    %2559 = vmatpush1.bf16.msra.mxu0 %v1836
    %2560 = vmatprep.subr.bf16.mxu0 %v1845
    %2561 = vmatpush1.bf16.msra.mxu0 %v1844
    %2562 = vmatprep.subr.bf16.mxu0 %v1853
    %2563 = vmatpush1.bf16.msra.mxu0 %v1852
    %2564 = vmatprep.subr.bf16.mxu0 %v1861
    %2565 = vmatpush1.bf16.msra.mxu0 %v1860
    %2566 = vmatprep.subr.bf16.mxu0 %v1869
    %2567 = vmatpush1.bf16.msra.mxu0 %v1868
    %2568 = vmatprep.subr.bf16.mxu0 %v1877
    %2569 = vmatpush1.bf16.msra.mxu0 %v1876
    %2570 = vmatprep.subr.bf16.mxu0 %v1885
    %2571 = vmatpush1.bf16.msra.mxu0 %v1884
    %2572 = vmatprep.subr.bf16.mxu0 %v1893
    %2573 = vmatpush1.bf16.msra.mxu0 %v1892
    %2574 = vmatprep.subr.bf16.mxu0 %v1901
    %2575 = vmatpush1.bf16.msra.mxu0 %v1900
    %2576 = vmatprep.subr.bf16.mxu0 %v1909
    %2577 = vmatpush1.bf16.msra.mxu0 %v1908
    %2578 = vmatprep.subr.bf16.mxu0 %v1917
    %2579 = vmatpush1.bf16.msra.mxu0 %v1916
    %2580 = vmatprep.mubr.bf16.mxu0 %v721
    %2581 = vmatmul.mubr.bf16.gmra.mrb[0].mxu0 %v720
    %v2582 = vpop.f32.mrb[0].mxu0
    %v2583 = vadd.f32 %v1009, %v2582
    %v2584 = vpop.f32.mrb[0].mxu0
    %v2585 = vadd.f32 %v1013, %v2584
    %v2586 = vpop.f32.mrb[0].mxu0
    %v2587 = vpop.f32.mrb[0].mxu0
    %2588 = vdwg.mxu0
    %2589 = vmatprep.subr.bf16.mxu0 %v1925
    %2590 = vmatpush1.bf16.msra.mxu0 %v1924
    %2591 = vmatprep.subr.bf16.mxu0 %v1933
    %2592 = vmatpush1.bf16.msra.mxu0 %v1932
    %2593 = vmatprep.subr.bf16.mxu0 %v1941
    %2594 = vmatpush1.bf16.msra.mxu0 %v1940
    %2595 = vmatprep.subr.bf16.mxu0 %v1949
    %2596 = vmatpush1.bf16.msra.mxu0 %v1948
    %2597 = vmatprep.subr.bf16.mxu0 %v1957
    %2598 = vmatpush1.bf16.msra.mxu0 %v1956
    %2599 = vmatprep.subr.bf16.mxu0 %v1965
    %2600 = vmatpush1.bf16.msra.mxu0 %v1964
    %2601 = vmatprep.subr.bf16.mxu0 %v1973
    %2602 = vmatpush1.bf16.msra.mxu0 %v1972
    %2603 = vmatprep.subr.bf16.mxu0 %v1981
    %2604 = vmatpush1.bf16.msra.mxu0 %v1980
    %2605 = vmatprep.subr.bf16.mxu0 %v1989
    %2606 = vmatpush1.bf16.msra.mxu0 %v1988
    %2607 = vmatprep.subr.bf16.mxu0 %v1997
    %2608 = vmatpush1.bf16.msra.mxu0 %v1996
    %2609 = vmatprep.subr.bf16.mxu0 %v2005
    %2610 = vmatpush1.bf16.msra.mxu0 %v2004
    %2611 = vmatprep.subr.bf16.mxu0 %v2013
    %2612 = vmatpush1.bf16.msra.mxu0 %v2012
    %2613 = vmatprep.subr.bf16.mxu0 %v2021
    %2614 = vmatpush1.bf16.msra.mxu0 %v2020
    %2615 = vmatprep.subr.bf16.mxu0 %v2029
    %2616 = vmatpush1.bf16.msra.mxu0 %v2028
    %2617 = vmatprep.subr.bf16.mxu0 %v2037
    %2618 = vmatpush1.bf16.msra.mxu0 %v2036
    %2619 = vmatprep.subr.bf16.mxu0 %v2045
    %2620 = vmatpush1.bf16.msra.mxu0 %v2044
    %2621 = vmatprep.mubr.bf16.mxu0 %v723
    %2622 = vmatmul.mubr.bf16.gmra.mrb[0].mxu0 %v722
    %v2623 = vpop.f32.mrb[0].mxu0
    %v2624 = vadd.f32 %v2583, %v2623
    %v2625 = vpop.f32.mrb[0].mxu0
    %v2626 = vadd.f32 %v2585, %v2625
    %v2627 = vpop.f32.mrb[0].mxu0
    %v2628 = vpop.f32.mrb[0].mxu0
    %2629 = vdwg.mxu0
    %v2630 = vmax.f32 %v2378, 0.0
    %v2631 = vmax.f32 %v2380, 0.0
    %v2632 = vmax.f32 %v2460, 0.0
    %v2633 = vmax.f32 %v2462, 0.0
    %v2634 = vmax.f32 %v2542, 0.0
    %v2635 = vmax.f32 %v2544, 0.0
    %v2636 = vmax.f32 %v2624, 0.0
    %v2637 = vmax.f32 %v2626, 0.0
    %v2638 = vpack.c.bf16 %v2630, %v2630
    %v2639 = vpack.c.bf16 %v2631, %v2631
    %v2640 = vpack.c.bf16 %v2632, %v2632
    %v2641 = vpack.c.bf16 %v2633, %v2633
    %v2642 = vpack.c.bf16 %v2634, %v2634
    %v2643 = vpack.c.bf16 %v2635, %v2635
    %v2644 = vpack.c.bf16 %v2636, %v2636
    %v2645 = vpack.c.bf16 %v2637, %v2637
    %v2654 = vcombine.low %v2638, %v2639
    %v2655 = vcombine.low %v2640, %v2641
    %v2656 = vcombine.low %v2642, %v2643
    %v2657 = vcombine.low %v2644, %v2645
    %v2659 = vunpack.c.l.s4 1966171168
    %v2660 = vunpack.c.0.s8 %v2659
    %v2661 = vlaneseq
    %v2662 = vshrl.u32 %v2661, 7
    %v2663 = vsub.s32 %v2660, %v2662
    %v2664 = vrot.slane %v2654, %v2663
    %v2666 = vunpack.c.l.s4 1966171168
    %v2667 = vunpack.c.0.s8 %v2666
    %v2668 = vlaneseq
    %v2669 = vshrl.u32 %v2668, 7
    %v2670 = vsub.s32 %v2667, %v2669
    %v2671 = vrot.slane %v2655, %v2670
    %v2673 = vunpack.c.l.s4 1966171168
    %v2674 = vunpack.c.0.s8 %v2673
    %v2675 = vlaneseq
    %v2676 = vshrl.u32 %v2675, 7
    %v2677 = vsub.s32 %v2674, %v2676
    %v2678 = vrot.slane %v2656, %v2677
    %v2680 = vunpack.c.l.s4 1966171168
    %v2681 = vunpack.c.0.s8 %v2680
    %v2682 = vlaneseq
    %v2683 = vshrl.u32 %v2682, 7
    %v2684 = vsub.s32 %v2681, %v2683
    %v2685 = vrot.slane %v2657, %v2684
    %v2686 = vcombine.low %v2664, %v2671
    %v2687 = vcombine.low %v2678, %v2685
    %v2689 = vunpack.c.l.s4 1966171168
    %v2690 = vunpack.c.0.s8 %v2689
    %v2691 = vlaneseq
    %v2692 = vshrl.u32 %v2691, 7
    %v2693 = vsub.s32 %v2690, %v2692
    %v2694 = vrot.slane %v2686, %v2693
    %v2696 = vunpack.c.l.s4 1966171168
    %v2697 = vunpack.c.0.s8 %v2696
    %v2698 = vlaneseq
    %v2699 = vshrl.u32 %v2698, 7
    %v2700 = vsub.s32 %v2697, %v2699
    %v2701 = vrot.slane %v2687, %v2700
    %v2702 = vcombine.low %v2694, %v2701
    %2704 = vst [vmem:[#allocation10] sm:$0xff] %v2702
    // Predicated region
    $region46: #{tpu_custom_call.1} parent=1 // pred_check
      _
    $region47: #{tpu_custom_call.1} parent=1 // pred_check_branch
      %2706 = sbr.rel (0) target = $region49
    $region48: #{tpu_custom_call.1} parent=1 // pred_region
      %s2708 = ssub.s32 128, 128
      %2709 = vsyncadd [#allocation4], %s2708
      %s2711 = sshll.u32 [#allocation10], 4
      %s2712 = int_to_ptr.vmem [resolvable:$true] %s2711
      %2714 = dma.vmem_to_hbm [thread:$0]  %s2712, 128, %s7, [#allocation4]
    $region49: #{tpu_custom_call.1} parent=1 // pred_fallthru
      _
    // Predicated region
    $region50: #{tpu_custom_call.1} parent=1 // pred_check
      _
    $region51: #{tpu_custom_call.1} parent=1 // pred_check_branch
      %2716 = sbr.rel (0) target = $region53
    $region52: #{tpu_custom_call.1} parent=1 // pred_region
      %2717 = dma.done [#allocation4], 128
    $region53: #{tpu_custom_call.1} parent=1 // pred_fallthru
      _
    %2718 = vsyncpa [#allocation3], 1
    %2719 = vsyncpa [#allocation6], 1
    %2720 = vsyncpa [#allocation9], 1
    %2721 = vsyncpa [#allocation4], 1

</llo_original>
